<compile_context>
chip_gen: v5e
topology: v5e:2x2
jax: 0.10.0
libtpu: 0.0.40
codegen_flags: <defaults>
</compile_context>

<pallas_src>
import jax
import jax.numpy as jnp
from jax import lax
from jax.experimental import pallas as pl
from jax.experimental.pallas import tpu as pltpu

_VMEM_LIMIT = 48 * 1024 * 1024     # under v7x's 64 MiB, lifts v5e's 16 MiB default


def _round_up(x, m):
    return ((x + m - 1) // m) * m


# ------------------------- GRU cell (in-kernel) ----------------------------- #
def _gru_step(x_bf, h, wx, wh, bx, bh, Hp):
    """One GRU step (PyTorch semantics).
    x_bf: (Bp, Hp) bf16.  h: (Bp, Hp) f32.
    wx/wh: (Hp, 3Hp) bf16, gate columns [r | z | n].
    bx/bh: (Bp, 3Hp) f32 pre-tiled b_ih / b_hh (broadcast hoisted to init)."""
    gx = jnp.dot(x_bf, wx, preferred_element_type=jnp.float32) + bx
    gh = jnp.dot(h.astype(jnp.bfloat16), wh,
                 preferred_element_type=jnp.float32) + bh
    r = jax.nn.sigmoid(gx[:, :Hp] + gh[:, :Hp])
    z = jax.nn.sigmoid(gx[:, Hp:2 * Hp] + gh[:, Hp:2 * Hp])
    n = jnp.tanh(gx[:, 2 * Hp:] + r * gh[:, 2 * Hp:])
    return (1.0 - z) * n + z * h


# ------------------------------- Encoder ------------------------------------ #
def encoder_kernel(slen_ref, x_ref, wx_ref, wh_ref, bx_ref, bh_ref, hf_ref):
    t_blk = x_ref.shape[0]
    Hp = hf_ref.shape[-1]

    @pl.when(pl.program_id(0) == 0)
    def _():
        hf_ref[...] = jnp.zeros_like(hf_ref)      # encoder.init_hidden == zeros

    wx = wx_ref[...]
    wh = wh_ref[...]
    bx = bx_ref[...]
    bh = bh_ref[...]
    s_real = slen_ref[0]
    t0 = pl.program_id(0) * t_blk

    def body(i, h):
        h_new = _gru_step(x_ref[i], h, wx, wh, bx, bh, Hp)
        return jnp.where(t0 + i < s_real, h_new, h)   # mask padded tail steps

    # Hidden state lives directly in the (constant-index) output block.
    hf_ref[...] = lax.fori_loop(0, t_blk, body, hf_ref[...], unroll=True)


def run_encoder(x_tm, wx, wh, bx, bh):
    """x_tm: (S, Bp, Hp) bf16 time-major padded source embeddings."""
    S, Bp, Hp = x_tm.shape
    t_blk = min(64, _round_up(S, 8))                  # big chunks, few grid steps
    S_pad = _round_up(S, t_blk)
    if S_pad != S:
        x_tm = jnp.pad(x_tm, ((0, S_pad - S), (0, 0), (0, 0)))
    slen = jnp.array([S], dtype=jnp.int32)

    return pl.pallas_call(
        encoder_kernel,
        out_shape=jax.ShapeDtypeStruct((Bp, Hp), jnp.float32),
        grid_spec=pltpu.PrefetchScalarGridSpec(
            num_scalar_prefetch=1,                    # real length -> SMEM
            grid=(S_pad // t_blk,),
            in_specs=[
                pl.BlockSpec((t_blk, Bp, Hp), lambda g, sl: (g, 0, 0)),
                pl.BlockSpec(wx.shape, lambda g, sl: (0, 0)),
                pl.BlockSpec(wh.shape, lambda g, sl: (0, 0)),
                pl.BlockSpec(bx.shape, lambda g, sl: (0, 0)),
                pl.BlockSpec(bh.shape, lambda g, sl: (0, 0)),
            ],
            out_specs=pl.BlockSpec((Bp, Hp), lambda g, sl: (0, 0)),
        ),
        compiler_params=pltpu.CompilerParams(
            dimension_semantics=("arbitrary",),
            vmem_limit_bytes=_VMEM_LIMIT),
    )(slen, x_tm, wx, wh, bx, bh)


# --------------------------- Fused decoder loop ----------------------------- #
def decoder_kernel(tf_ref, tgt_ref, h0_ref, demb_ref, wx_ref, wh_ref,
                   bx_ref, bh_ref, wout_ref, bout_ref, out_ref,
                   h_scr, logit_scr, x_scr):
    Bp, Hp = h0_ref.shape
    Vp = wout_ref.shape[-1]
    g = pl.program_id(0)                              # g = t - 1

    @pl.when(g == 0)
    def _():
        h_scr[...] = h0_ref[...]

    use_target = jnp.logical_or(g == 0, tf_ref[g] == 1)

    # ---- teacher path: pre-gathered embedding of target[:, t-1] ------------
    @pl.when(use_target)
    def _():
        x_scr[...] = tgt_ref[0]

    # ---- greedy path: argmax of previous logits -> embedding ---------------
    @pl.when(jnp.logical_not(use_target))
    def _():
        lane = lax.broadcasted_iota(jnp.int32, (Bp, Vp), 1)
        prev = logit_scr[...]      # padded vocab columns are ~-1e30 via bout
        m = jnp.max(prev, axis=1, keepdims=True)
        idx = jnp.min(jnp.where(prev == m, lane, Vp), axis=1, keepdims=True)
        onehot = (lane == idx).astype(jnp.bfloat16)
        # TODO(synk): at realistic V, replace with a DMA row-gather from HBM
        # (demb in pl.ANY) so the table is not VMEM-resident.
        x_scr[...] = jnp.dot(onehot, demb_ref[...],
                             preferred_element_type=jnp.float32
                             ).astype(jnp.bfloat16)

    # ---- GRU cell + output projection ---------------------------------------
    h_new = _gru_step(x_scr[...], h_scr[...], wx_ref[...], wh_ref[...],
                      bx_ref[...], bh_ref[...], Hp)
    h_scr[...] = h_new

    # TODO(synk): tile this projection over V (extra grid axis / inner
    # pipeline) with an online argmax for realistic vocab sizes (v7x VMEM).
    logits = (jnp.dot(h_new.astype(jnp.bfloat16), wout_ref[...],
                      preferred_element_type=jnp.float32) + bout_ref[...])
    logit_scr[...] = logits
    out_ref[0] = logits


def run_decoder(tf_flags, tgt_emb, h0, demb, wx, wh, bx, bh, wout, bout):
    Tm1, Bp, Hp = tgt_emb.shape
    Vp = wout.shape[-1]
    return pl.pallas_call(
        decoder_kernel,
        out_shape=jax.ShapeDtypeStruct((Tm1, Bp, Vp), jnp.float32),
        grid_spec=pltpu.PrefetchScalarGridSpec(
            num_scalar_prefetch=1,                    # tf_flags -> SMEM
            grid=(Tm1,),
            in_specs=[
                pl.BlockSpec((1, Bp, Hp), lambda g, tf: (g, 0, 0)),   # teacher emb
                pl.BlockSpec((Bp, Hp), lambda g, tf: (0, 0)),         # h0
                pl.BlockSpec(demb.shape, lambda g, tf: (0, 0)),       # emb table
                pl.BlockSpec(wx.shape, lambda g, tf: (0, 0)),         # GRU Wx
                pl.BlockSpec(wh.shape, lambda g, tf: (0, 0)),         # GRU Wh
                pl.BlockSpec(bx.shape, lambda g, tf: (0, 0)),         # GRU bx
                pl.BlockSpec(bh.shape, lambda g, tf: (0, 0)),         # GRU bh
                pl.BlockSpec(wout.shape, lambda g, tf: (0, 0)),       # proj W
                pl.BlockSpec(bout.shape, lambda g, tf: (0, 0)),       # proj b
            ],
            out_specs=pl.BlockSpec((1, Bp, Vp), lambda g, tf: (g, 0, 0)),
            scratch_shapes=[pltpu.VMEM((Bp, Hp), jnp.float32),     # hidden
                            pltpu.VMEM((Bp, Vp), jnp.float32),     # prev logits
                            pltpu.VMEM((Bp, Hp), jnp.bfloat16)],   # step input
        ),
        compiler_params=pltpu.CompilerParams(
            dimension_semantics=("arbitrary",),
            vmem_limit_bytes=_VMEM_LIMIT),
    )(tf_flags, tgt_emb, h0, demb, wx, wh, bx, bh, wout, bout)


# ---------------------- PyTorch-layout -> kernel layout --------------------- #
def _pad2(a, rows, cols):
    r, c = a.shape
    return jnp.pad(a, ((0, rows - r), (0, cols - c)))


def _split_gru(w_ih, w_hh, b_ih, b_hh, H, Hp, Bp):
    """torch GRU params (w_*: (3H,H), b_*: (3H,), gate order [r,z,n]) ->
    padded split layout: Wx/Wh (Hp,3Hp) bf16, bx/bh (Bp,3Hp) f32."""
    wi_t, wh_t = w_ih.T, w_hh.T            # (H, 3H), columns [r | z | n]
    wx = jnp.zeros((Hp, 3 * Hp), jnp.float32)
    wh = jnp.zeros((Hp, 3 * Hp), jnp.float32)
    bx = jnp.zeros((3 * Hp,), jnp.float32)
    bh = jnp.zeros((3 * Hp,), jnp.float32)
    for gi in range(3):
        wx = wx.at[:H, gi * Hp:gi * Hp + H].set(wi_t[:, gi * H:(gi + 1) * H])
        wh = wh.at[:H, gi * Hp:gi * Hp + H].set(wh_t[:, gi * H:(gi + 1) * H])
        bx = bx.at[gi * Hp:gi * Hp + H].set(b_ih[gi * H:(gi + 1) * H])
        bh = bh.at[gi * Hp:gi * Hp + H].set(b_hh[gi * H:(gi + 1) * H])
    bx = jnp.tile(bx[None, :], (Bp, 1))    # hoisted bias broadcasts
    bh = jnp.tile(bh[None, :], (Bp, 1))
    return wx.astype(jnp.bfloat16), wh.astype(jnp.bfloat16), bx, bh


def init_params(key, src_vocab, tgt_vocab, hidden, batch):
    H, V = hidden, tgt_vocab
    Hp = _round_up(H, 128)
    Vp = _round_up(V, 128)
    Bp = _round_up(max(batch, 16), 16)     # full (16,128) bf16 tiles
    ks = jax.random.split(key, 10)
    s = 0.1
    nrm = lambda k, shp: s * jax.random.normal(k, shp, jnp.float32)

    # PyTorch-layout raw parameters
    enc_emb = nrm(ks[0], (src_vocab, H))
    enc_wih, enc_whh = nrm(ks[1], (3 * H, H)), nrm(ks[2], (3 * H, H))
    enc_bih, enc_bhh = nrm(ks[3], (3 * H,)), nrm(ks[4], (3 * H,))
    dec_emb = nrm(ks[5], (V, H))
    dec_wih, dec_whh = nrm(ks[6], (3 * H, H)), nrm(ks[7], (3 * H, H))
    dec_bih, dec_bhh = jnp.zeros((3 * H,)), jnp.zeros((3 * H,))
    out_w, out_b = nrm(ks[8], (V, H)), jnp.zeros((V,))

    enc_wx, enc_wh, enc_bx, enc_bh = _split_gru(enc_wih, enc_whh, enc_bih,
                                                enc_bhh, H, Hp, Bp)
    dec_wx, dec_wh, dec_bx, dec_bh = _split_gru(dec_wih, dec_whh, dec_bih,
                                                dec_bhh, H, Hp, Bp)

    # Output bias: vocab-padding mask baked in (-1e30 in padded columns),
    # so the decoder never re-masks per step.
    bout_row = jnp.full((Vp,), -1e30, jnp.float32).at[:V].set(out_b)
    dec_bout = jnp.tile(bout_row[None, :], (Bp, 1))

    return {
        "H": H, "V": V, "Hp": Hp, "Vp": Vp, "Bp": Bp,
        "enc_emb": _pad2(enc_emb, src_vocab, Hp).astype(jnp.bfloat16),
        "enc_wx": enc_wx, "enc_wh": enc_wh, "enc_bx": enc_bx, "enc_bh": enc_bh,
        "dec_emb": _pad2(dec_emb, Vp, Hp).astype(jnp.bfloat16),
        "dec_wx": dec_wx, "dec_wh": dec_wh, "dec_bx": dec_bx, "dec_bh": dec_bh,
        "dec_wout": _pad2(out_w.T, Hp, Vp).astype(jnp.bfloat16),
        "dec_bout": dec_bout,
    }


# ------------------------------ Seq2Seq glue -------------------------------- #
def seq2seq_forward(params, source, target, teacher_forcing_ratio, key):
    B, T = target.shape
    Bp, V = params["Bp"], params["V"]

    # Encoder: embedding gather (glue, bf16) + fused Pallas GRU over source.
    src_emb = jnp.take(params["enc_emb"], source, axis=0)        # (B, S, Hp) bf16
    x_tm = jnp.transpose(src_emb, (1, 0, 2))                     # (S, B, Hp)
    x_tm = jnp.pad(x_tm, ((0, 0), (0, Bp - B), (0, 0)))          # (S, Bp, Hp)
    hidden = run_encoder(x_tm, params["enc_wx"], params["enc_wh"],
                         params["enc_bx"], params["enc_bh"])

    if T <= 1:
        return jnp.zeros((B, T, V), jnp.float32)

    # Teacher-forcing decisions (one uniform draw per step, as torch.rand(1)).
    tf_flags = (jax.random.uniform(key, (T,)) <
                teacher_forcing_ratio).astype(jnp.int32)

    # Pre-gather the teacher-token embeddings feeding steps t = 1..T-1 (bf16).
    tgt_emb = jnp.take(params["dec_emb"], target[:, :T - 1], axis=0)
    tgt_emb = jnp.transpose(tgt_emb, (1, 0, 2))                  # (T-1, B, Hp)
    tgt_emb = jnp.pad(tgt_emb, ((0, 0), (0, Bp - B), (0, 0)))    # (T-1, Bp, Hp)

    dec_logits = run_decoder(
        tf_flags, tgt_emb, hidden,
        params["dec_emb"], params["dec_wx"], params["dec_wh"],
        params["dec_bx"], params["dec_bh"],
        params["dec_wout"], params["dec_bout"])                  # (T-1, Bp, Vp)

    logits = jnp.transpose(dec_logits[:, :B, :V], (1, 0, 2))     # (B, T-1, V)
    return jnp.concatenate(
        [jnp.zeros((B, 1, V), jnp.float32), logits], axis=1)     # outputs[:,0]=0


if __name__ == "__main__":
    B, S, T, H = 2, 8, 8, 32
    SRC_VOCAB, TGT_VOCAB = 16, 16

    root = jax.random.PRNGKey(0)
    k_params, k_src, k_tgt, k_tf = jax.random.split(root, 4)
    params = init_params(k_params, SRC_VOCAB, TGT_VOCAB, H, batch=B)

    source = jax.random.randint(k_src, (B, S), 0, SRC_VOCAB, dtype=jnp.int32)
    target = jax.random.randint(k_tgt, (B, T), 0, TGT_VOCAB, dtype=jnp.int32)

    outputs = seq2seq_forward(params, source, target,
                              teacher_forcing_ratio=0.5, key=k_tf)
    outputs = jax.block_until_ready(outputs)
    assert outputs.shape == (B, T, TGT_VOCAB)
    assert bool(jnp.all(outputs[:, 0] == 0.0))    # outputs[:,0] stays zero
    assert bool(jnp.all(jnp.isfinite(outputs)))
    print("KERNEL_OK")
</pallas_src>

<mosaic_0001>
module attributes {stable_mosaic.version = 11 : i64} {
  func.func @encoder_kernel(%arg0: i32, %arg1: memref<1xi32, #tpu.memory_space<smem>>, %arg2: memref<8x16x128xbf16, #tpu.memory_space<vmem>>, %arg3: memref<128x384xbf16, #tpu.memory_space<vmem>>, %arg4: memref<128x384xbf16, #tpu.memory_space<vmem>>, %arg5: memref<16x384xf32, #tpu.memory_space<vmem>>, %arg6: memref<16x384xf32, #tpu.memory_space<vmem>>, %arg7: memref<16x128xf32, #tpu.memory_space<vmem>>) attributes {dimension_semantics = [#tpu.dimension_semantics<arbitrary>], iteration_bounds = array<i64: 1>, scalar_prefetch = 1 : i64, scratch_operands = 0 : i64, tpu.core_type = #tpu.core_type<tc>, window_params = [{transform_indices = @transform_0, window_bounds = array<i64: 8, 16, 128>}, {pipeline_mode = #tpu.pipeline_mode<synchronous>, transform_indices = @transform_1, window_bounds = array<i64: 128, 384>}, {pipeline_mode = #tpu.pipeline_mode<synchronous>, transform_indices = @transform_2, window_bounds = array<i64: 128, 384>}, {pipeline_mode = #tpu.pipeline_mode<synchronous>, transform_indices = @transform_3, window_bounds = array<i64: 16, 384>}, {pipeline_mode = #tpu.pipeline_mode<synchronous>, transform_indices = @transform_4, window_bounds = array<i64: 16, 384>}, {pipeline_mode = #tpu.pipeline_mode<synchronous>, transform_indices = @transform_5, window_bounds = array<i64: 16, 128>}]} {
    %c0_i32 = arith.constant 0 : i32
    %0 = arith.cmpi eq, %arg0, %c0_i32 : i32
    %1 = arith.extui %0 : i1 to i32
    %c0_i32_0 = arith.constant 0 : i32
    %2 = arith.cmpi ne, %1, %c0_i32_0 : i32
    scf.if %2 {
      %cst_70 = arith.constant 0.000000e+00 : f32
      %307 = vector.broadcast %cst_70 : f32 to vector<16x128xf32>
      %c0_71 = arith.constant 0 : index
      %c0_72 = arith.constant 0 : index
      %308 = vector.load %arg7[%c0_71, %c0_72] : memref<16x128xf32, #tpu.memory_space<vmem>>, vector<16x128xf32>
      tpu.vector_store %arg7[%c0_71, %c0_72], %307 {strides = array<i32>} : memref<16x128xf32, #tpu.memory_space<vmem>>, vector<16x128xf32>,
    } else {
    }
    %c0 = arith.constant 0 : index
    %c0_1 = arith.constant 0 : index
    %3 = vector.load %arg3[%c0, %c0_1] : memref<128x384xbf16, #tpu.memory_space<vmem>>, vector<128x384xbf16>
    %c0_2 = arith.constant 0 : index
    %c0_3 = arith.constant 0 : index
    %4 = vector.load %arg4[%c0_2, %c0_3] : memref<128x384xbf16, #tpu.memory_space<vmem>>, vector<128x384xbf16>
    %c0_4 = arith.constant 0 : index
    %c0_5 = arith.constant 0 : index
    %5 = vector.load %arg5[%c0_4, %c0_5] : memref<16x384xf32, #tpu.memory_space<vmem>>, vector<16x384xf32>
    %c0_6 = arith.constant 0 : index
    %c0_7 = arith.constant 0 : index
    %6 = vector.load %arg6[%c0_6, %c0_7] : memref<16x384xf32, #tpu.memory_space<vmem>>, vector<16x384xf32>
    %c0_8 = arith.constant 0 : index
    %7 = memref.load %arg1[%c0_8] : memref<1xi32, #tpu.memory_space<smem>>
    %c8_i32 = arith.constant 8 : i32
    %8 = arith.muli %arg0, %c8_i32 : i32
    %c0_9 = arith.constant 0 : index
    %c0_10 = arith.constant 0 : index
    %9 = vector.load %arg7[%c0_9, %c0_10] : memref<16x128xf32, #tpu.memory_space<vmem>>, vector<16x128xf32>
    %c0_i32_11 = arith.constant 0 : i32
    %10 = arith.index_cast %c0_i32_11 : i32 to index
    %c0_12 = arith.constant 0 : index
    %c0_13 = arith.constant 0 : index
    %11 = vector.load %arg2[%10, %c0_12, %c0_13] : memref<8x16x128xbf16, #tpu.memory_space<vmem>>, vector<1x16x128xbf16>
    %12 = vector.shape_cast %11 : vector<1x16x128xbf16> to vector<16x128xbf16>
    %cst = arith.constant dense<0.000000e+00> : vector<16x384xf32>
    %13 = tpu.matmul %12, %3, %cst {dimension_numbers = #tpu.dot_dimension_numbers<[1], [0], [0], [1], [0, 0, 1, 1], [], []>} : vector<16x128xbf16>, vector<128x384xbf16>, vector<16x384xf32> -> vector<16x384xf32>
    %14 = arith.addf %13, %5 : vector<16x384xf32>
    %15 = arith.truncf %9 : vector<16x128xf32> to vector<16x128xbf16>
    %cst_14 = arith.constant dense<0.000000e+00> : vector<16x384xf32>
    %16 = tpu.matmul %15, %4, %cst_14 {dimension_numbers = #tpu.dot_dimension_numbers<[1], [0], [0], [1], [0, 0, 1, 1], [], []>} : vector<16x128xbf16>, vector<128x384xbf16>, vector<16x384xf32> -> vector<16x384xf32>
    %17 = arith.addf %16, %6 : vector<16x384xf32>
    %18 = vector.extract_strided_slice %14 {offsets = [0, 0], sizes = [16, 128], strides = [1, 1]} : vector<16x384xf32> to vector<16x128xf32>
    %19 = vector.extract_strided_slice %17 {offsets = [0, 0], sizes = [16, 128], strides = [1, 1]} : vector<16x384xf32> to vector<16x128xf32>
    %20 = arith.addf %18, %19 : vector<16x128xf32>
    %21 = arith.negf %20 : vector<16x128xf32>
    %22 = math.exp %21 : vector<16x128xf32>
    %cst_15 = arith.constant 1.000000e+00 : f32
    %23 = vector.broadcast %cst_15 : f32 to vector<16x128xf32>
    %24 = arith.addf %23, %22 : vector<16x128xf32>
    %25 = arith.divf %23, %24 : vector<16x128xf32>
    %26 = vector.extract_strided_slice %14 {offsets = [0, 128], sizes = [16, 128], strides = [1, 1]} : vector<16x384xf32> to vector<16x128xf32>
    %27 = vector.extract_strided_slice %17 {offsets = [0, 128], sizes = [16, 128], strides = [1, 1]} : vector<16x384xf32> to vector<16x128xf32>
    %28 = arith.addf %26, %27 : vector<16x128xf32>
    %29 = arith.negf %28 : vector<16x128xf32>
    %30 = math.exp %29 : vector<16x128xf32>
    %cst_16 = arith.constant 1.000000e+00 : f32
    %31 = vector.broadcast %cst_16 : f32 to vector<16x128xf32>
    %32 = arith.addf %31, %30 : vector<16x128xf32>
    %33 = arith.divf %31, %32 : vector<16x128xf32>
    %34 = vector.extract_strided_slice %14 {offsets = [0, 256], sizes = [16, 128], strides = [1, 1]} : vector<16x384xf32> to vector<16x128xf32>
    %35 = vector.extract_strided_slice %17 {offsets = [0, 256], sizes = [16, 128], strides = [1, 1]} : vector<16x384xf32> to vector<16x128xf32>
    %36 = arith.mulf %25, %35 : vector<16x128xf32>
    %37 = arith.addf %34, %36 : vector<16x128xf32>
    %38 = math.tanh %37 : vector<16x128xf32>
    %cst_17 = arith.constant 1.000000e+00 : f32
    %39 = vector.broadcast %cst_17 : f32 to vector<16x128xf32>
    %40 = arith.subf %39, %33 : vector<16x128xf32>
    %41 = arith.mulf %40, %38 : vector<16x128xf32>
    %42 = arith.mulf %33, %9 : vector<16x128xf32>
    %43 = arith.addf %41, %42 : vector<16x128xf32>
    %44 = arith.addi %8, %c0_i32_11 : i32
    %45 = arith.cmpi slt, %44, %7 : i32
    %46 = arith.select %45, %43, %9 : vector<16x128xf32>
    %c1_i32 = arith.constant 1 : i32
    %47 = arith.index_cast %c1_i32 : i32 to index
    %c0_18 = arith.constant 0 : index
    %c0_19 = arith.constant 0 : index
    %48 = vector.load %arg2[%47, %c0_18, %c0_19] : memref<8x16x128xbf16, #tpu.memory_space<vmem>>, vector<1x16x128xbf16>
    %49 = vector.shape_cast %48 : vector<1x16x128xbf16> to vector<16x128xbf16>
    %cst_20 = arith.constant dense<0.000000e+00> : vector<16x384xf32>
    %50 = tpu.matmul %49, %3, %cst_20 {dimension_numbers = #tpu.dot_dimension_numbers<[1], [0], [0], [1], [0, 0, 1, 1], [], []>} : vector<16x128xbf16>, vector<128x384xbf16>, vector<16x384xf32> -> vector<16x384xf32>
    %51 = arith.addf %50, %5 : vector<16x384xf32>
    %52 = arith.truncf %46 : vector<16x128xf32> to vector<16x128xbf16>
    %cst_21 = arith.constant dense<0.000000e+00> : vector<16x384xf32>
    %53 = tpu.matmul %52, %4, %cst_21 {dimension_numbers = #tpu.dot_dimension_numbers<[1], [0], [0], [1], [0, 0, 1, 1], [], []>} : vector<16x128xbf16>, vector<128x384xbf16>, vector<16x384xf32> -> vector<16x384xf32>
    %54 = arith.addf %53, %6 : vector<16x384xf32>
    %55 = vector.extract_strided_slice %51 {offsets = [0, 0], sizes = [16, 128], strides = [1, 1]} : vector<16x384xf32> to vector<16x128xf32>
    %56 = vector.extract_strided_slice %54 {offsets = [0, 0], sizes = [16, 128], strides = [1, 1]} : vector<16x384xf32> to vector<16x128xf32>
    %57 = arith.addf %55, %56 : vector<16x128xf32>
    %58 = arith.negf %57 : vector<16x128xf32>
    %59 = math.exp %58 : vector<16x128xf32>
    %cst_22 = arith.constant 1.000000e+00 : f32
    %60 = vector.broadcast %cst_22 : f32 to vector<16x128xf32>
    %61 = arith.addf %60, %59 : vector<16x128xf32>
    %62 = arith.divf %60, %61 : vector<16x128xf32>
    %63 = vector.extract_strided_slice %51 {offsets = [0, 128], sizes = [16, 128], strides = [1, 1]} : vector<16x384xf32> to vector<16x128xf32>
    %64 = vector.extract_strided_slice %54 {offsets = [0, 128], sizes = [16, 128], strides = [1, 1]} : vector<16x384xf32> to vector<16x128xf32>
    %65 = arith.addf %63, %64 : vector<16x128xf32>
    %66 = arith.negf %65 : vector<16x128xf32>
    %67 = math.exp %66 : vector<16x128xf32>
    %cst_23 = arith.constant 1.000000e+00 : f32
    %68 = vector.broadcast %cst_23 : f32 to vector<16x128xf32>
    %69 = arith.addf %68, %67 : vector<16x128xf32>
    %70 = arith.divf %68, %69 : vector<16x128xf32>
    %71 = vector.extract_strided_slice %51 {offsets = [0, 256], sizes = [16, 128], strides = [1, 1]} : vector<16x384xf32> to vector<16x128xf32>
    %72 = vector.extract_strided_slice %54 {offsets = [0, 256], sizes = [16, 128], strides = [1, 1]} : vector<16x384xf32> to vector<16x128xf32>
    %73 = arith.mulf %62, %72 : vector<16x128xf32>
    %74 = arith.addf %71, %73 : vector<16x128xf32>
    %75 = math.tanh %74 : vector<16x128xf32>
    %cst_24 = arith.constant 1.000000e+00 : f32
    %76 = vector.broadcast %cst_24 : f32 to vector<16x128xf32>
    %77 = arith.subf %76, %70 : vector<16x128xf32>
    %78 = arith.mulf %77, %75 : vector<16x128xf32>
    %79 = arith.mulf %70, %46 : vector<16x128xf32>
    %80 = arith.addf %78, %79 : vector<16x128xf32>
    %81 = arith.addi %8, %c1_i32 : i32
    %82 = arith.cmpi slt, %81, %7 : i32
    %83 = arith.select %82, %80, %46 : vector<16x128xf32>
    %c2_i32 = arith.constant 2 : i32
    %84 = arith.index_cast %c2_i32 : i32 to index
    %c0_25 = arith.constant 0 : index
    %c0_26 = arith.constant 0 : index
    %85 = vector.load %arg2[%84, %c0_25, %c0_26] : memref<8x16x128xbf16, #tpu.memory_space<vmem>>, vector<1x16x128xbf16>
    %86 = vector.shape_cast %85 : vector<1x16x128xbf16> to vector<16x128xbf16>
    %cst_27 = arith.constant dense<0.000000e+00> : vector<16x384xf32>
    %87 = tpu.matmul %86, %3, %cst_27 {dimension_numbers = #tpu.dot_dimension_numbers<[1], [0], [0], [1], [0, 0, 1, 1], [], []>} : vector<16x128xbf16>, vector<128x384xbf16>, vector<16x384xf32> -> vector<16x384xf32>
    %88 = arith.addf %87, %5 : vector<16x384xf32>
    %89 = arith.truncf %83 : vector<16x128xf32> to vector<16x128xbf16>
    %cst_28 = arith.constant dense<0.000000e+00> : vector<16x384xf32>
    %90 = tpu.matmul %89, %4, %cst_28 {dimension_numbers = #tpu.dot_dimension_numbers<[1], [0], [0], [1], [0, 0, 1, 1], [], []>} : vector<16x128xbf16>, vector<128x384xbf16>, vector<16x384xf32> -> vector<16x384xf32>
    %91 = arith.addf %90, %6 : vector<16x384xf32>
    %92 = vector.extract_strided_slice %88 {offsets = [0, 0], sizes = [16, 128], strides = [1, 1]} : vector<16x384xf32> to vector<16x128xf32>
    %93 = vector.extract_strided_slice %91 {offsets = [0, 0], sizes = [16, 128], strides = [1, 1]} : vector<16x384xf32> to vector<16x128xf32>
    %94 = arith.addf %92, %93 : vector<16x128xf32>
    %95 = arith.negf %94 : vector<16x128xf32>
    %96 = math.exp %95 : vector<16x128xf32>
    %cst_29 = arith.constant 1.000000e+00 : f32
    %97 = vector.broadcast %cst_29 : f32 to vector<16x128xf32>
    %98 = arith.addf %97, %96 : vector<16x128xf32>
    %99 = arith.divf %97, %98 : vector<16x128xf32>
    %100 = vector.extract_strided_slice %88 {offsets = [0, 128], sizes = [16, 128], strides = [1, 1]} : vector<16x384xf32> to vector<16x128xf32>
    %101 = vector.extract_strided_slice %91 {offsets = [0, 128], sizes = [16, 128], strides = [1, 1]} : vector<16x384xf32> to vector<16x128xf32>
    %102 = arith.addf %100, %101 : vector<16x128xf32>
    %103 = arith.negf %102 : vector<16x128xf32>
    %104 = math.exp %103 : vector<16x128xf32>
    %cst_30 = arith.constant 1.000000e+00 : f32
    %105 = vector.broadcast %cst_30 : f32 to vector<16x128xf32>
    %106 = arith.addf %105, %104 : vector<16x128xf32>
    %107 = arith.divf %105, %106 : vector<16x128xf32>
    %108 = vector.extract_strided_slice %88 {offsets = [0, 256], sizes = [16, 128], strides = [1, 1]} : vector<16x384xf32> to vector<16x128xf32>
    %109 = vector.extract_strided_slice %91 {offsets = [0, 256], sizes = [16, 128], strides = [1, 1]} : vector<16x384xf32> to vector<16x128xf32>
    %110 = arith.mulf %99, %109 : vector<16x128xf32>
    %111 = arith.addf %108, %110 : vector<16x128xf32>
    %112 = math.tanh %111 : vector<16x128xf32>
    %cst_31 = arith.constant 1.000000e+00 : f32
    %113 = vector.broadcast %cst_31 : f32 to vector<16x128xf32>
    %114 = arith.subf %113, %107 : vector<16x128xf32>
    %115 = arith.mulf %114, %112 : vector<16x128xf32>
    %116 = arith.mulf %107, %83 : vector<16x128xf32>
    %117 = arith.addf %115, %116 : vector<16x128xf32>
    %118 = arith.addi %8, %c2_i32 : i32
    %119 = arith.cmpi slt, %118, %7 : i32
    %120 = arith.select %119, %117, %83 : vector<16x128xf32>
    %c3_i32 = arith.constant 3 : i32
    %121 = arith.index_cast %c3_i32 : i32 to index
    %c0_32 = arith.constant 0 : index
    %c0_33 = arith.constant 0 : index
    %122 = vector.load %arg2[%121, %c0_32, %c0_33] : memref<8x16x128xbf16, #tpu.memory_space<vmem>>, vector<1x16x128xbf16>
    %123 = vector.shape_cast %122 : vector<1x16x128xbf16> to vector<16x128xbf16>
    %cst_34 = arith.constant dense<0.000000e+00> : vector<16x384xf32>
    %124 = tpu.matmul %123, %3, %cst_34 {dimension_numbers = #tpu.dot_dimension_numbers<[1], [0], [0], [1], [0, 0, 1, 1], [], []>} : vector<16x128xbf16>, vector<128x384xbf16>, vector<16x384xf32> -> vector<16x384xf32>
    %125 = arith.addf %124, %5 : vector<16x384xf32>
    %126 = arith.truncf %120 : vector<16x128xf32> to vector<16x128xbf16>
    %cst_35 = arith.constant dense<0.000000e+00> : vector<16x384xf32>
    %127 = tpu.matmul %126, %4, %cst_35 {dimension_numbers = #tpu.dot_dimension_numbers<[1], [0], [0], [1], [0, 0, 1, 1], [], []>} : vector<16x128xbf16>, vector<128x384xbf16>, vector<16x384xf32> -> vector<16x384xf32>
    %128 = arith.addf %127, %6 : vector<16x384xf32>
    %129 = vector.extract_strided_slice %125 {offsets = [0, 0], sizes = [16, 128], strides = [1, 1]} : vector<16x384xf32> to vector<16x128xf32>
    %130 = vector.extract_strided_slice %128 {offsets = [0, 0], sizes = [16, 128], strides = [1, 1]} : vector<16x384xf32> to vector<16x128xf32>
    %131 = arith.addf %129, %130 : vector<16x128xf32>
    %132 = arith.negf %131 : vector<16x128xf32>
    %133 = math.exp %132 : vector<16x128xf32>
    %cst_36 = arith.constant 1.000000e+00 : f32
    %134 = vector.broadcast %cst_36 : f32 to vector<16x128xf32>
    %135 = arith.addf %134, %133 : vector<16x128xf32>
    %136 = arith.divf %134, %135 : vector<16x128xf32>
    %137 = vector.extract_strided_slice %125 {offsets = [0, 128], sizes = [16, 128], strides = [1, 1]} : vector<16x384xf32> to vector<16x128xf32>
    %138 = vector.extract_strided_slice %128 {offsets = [0, 128], sizes = [16, 128], strides = [1, 1]} : vector<16x384xf32> to vector<16x128xf32>
    %139 = arith.addf %137, %138 : vector<16x128xf32>
    %140 = arith.negf %139 : vector<16x128xf32>
    %141 = math.exp %140 : vector<16x128xf32>
    %cst_37 = arith.constant 1.000000e+00 : f32
    %142 = vector.broadcast %cst_37 : f32 to vector<16x128xf32>
    %143 = arith.addf %142, %141 : vector<16x128xf32>
    %144 = arith.divf %142, %143 : vector<16x128xf32>
    %145 = vector.extract_strided_slice %125 {offsets = [0, 256], sizes = [16, 128], strides = [1, 1]} : vector<16x384xf32> to vector<16x128xf32>
    %146 = vector.extract_strided_slice %128 {offsets = [0, 256], sizes = [16, 128], strides = [1, 1]} : vector<16x384xf32> to vector<16x128xf32>
    %147 = arith.mulf %136, %146 : vector<16x128xf32>
    %148 = arith.addf %145, %147 : vector<16x128xf32>
    %149 = math.tanh %148 : vector<16x128xf32>
    %cst_38 = arith.constant 1.000000e+00 : f32
    %150 = vector.broadcast %cst_38 : f32 to vector<16x128xf32>
    %151 = arith.subf %150, %144 : vector<16x128xf32>
    %152 = arith.mulf %151, %149 : vector<16x128xf32>
    %153 = arith.mulf %144, %120 : vector<16x128xf32>
    %154 = arith.addf %152, %153 : vector<16x128xf32>
    %155 = arith.addi %8, %c3_i32 : i32
    %156 = arith.cmpi slt, %155, %7 : i32
    %157 = arith.select %156, %154, %120 : vector<16x128xf32>
    %c4_i32 = arith.constant 4 : i32
    %158 = arith.index_cast %c4_i32 : i32 to index
    %c0_39 = arith.constant 0 : index
    %c0_40 = arith.constant 0 : index
    %159 = vector.load %arg2[%158, %c0_39, %c0_40] : memref<8x16x128xbf16, #tpu.memory_space<vmem>>, vector<1x16x128xbf16>
    %160 = vector.shape_cast %159 : vector<1x16x128xbf16> to vector<16x128xbf16>
    %cst_41 = arith.constant dense<0.000000e+00> : vector<16x384xf32>
    %161 = tpu.matmul %160, %3, %cst_41 {dimension_numbers = #tpu.dot_dimension_numbers<[1], [0], [0], [1], [0, 0, 1, 1], [], []>} : vector<16x128xbf16>, vector<128x384xbf16>, vector<16x384xf32> -> vector<16x384xf32>
    %162 = arith.addf %161, %5 : vector<16x384xf32>
    %163 = arith.truncf %157 : vector<16x128xf32> to vector<16x128xbf16>
    %cst_42 = arith.constant dense<0.000000e+00> : vector<16x384xf32>
    %164 = tpu.matmul %163, %4, %cst_42 {dimension_numbers = #tpu.dot_dimension_numbers<[1], [0], [0], [1], [0, 0, 1, 1], [], []>} : vector<16x128xbf16>, vector<128x384xbf16>, vector<16x384xf32> -> vector<16x384xf32>
    %165 = arith.addf %164, %6 : vector<16x384xf32>
    %166 = vector.extract_strided_slice %162 {offsets = [0, 0], sizes = [16, 128], strides = [1, 1]} : vector<16x384xf32> to vector<16x128xf32>
    %167 = vector.extract_strided_slice %165 {offsets = [0, 0], sizes = [16, 128], strides = [1, 1]} : vector<16x384xf32> to vector<16x128xf32>
    %168 = arith.addf %166, %167 : vector<16x128xf32>
    %169 = arith.negf %168 : vector<16x128xf32>
    %170 = math.exp %169 : vector<16x128xf32>
    %cst_43 = arith.constant 1.000000e+00 : f32
    %171 = vector.broadcast %cst_43 : f32 to vector<16x128xf32>
    %172 = arith.addf %171, %170 : vector<16x128xf32>
    %173 = arith.divf %171, %172 : vector<16x128xf32>
    %174 = vector.extract_strided_slice %162 {offsets = [0, 128], sizes = [16, 128], strides = [1, 1]} : vector<16x384xf32> to vector<16x128xf32>
    %175 = vector.extract_strided_slice %165 {offsets = [0, 128], sizes = [16, 128], strides = [1, 1]} : vector<16x384xf32> to vector<16x128xf32>
    %176 = arith.addf %174, %175 : vector<16x128xf32>
    %177 = arith.negf %176 : vector<16x128xf32>
    %178 = math.exp %177 : vector<16x128xf32>
    %cst_44 = arith.constant 1.000000e+00 : f32
    %179 = vector.broadcast %cst_44 : f32 to vector<16x128xf32>
    %180 = arith.addf %179, %178 : vector<16x128xf32>
    %181 = arith.divf %179, %180 : vector<16x128xf32>
    %182 = vector.extract_strided_slice %162 {offsets = [0, 256], sizes = [16, 128], strides = [1, 1]} : vector<16x384xf32> to vector<16x128xf32>
    %183 = vector.extract_strided_slice %165 {offsets = [0, 256], sizes = [16, 128], strides = [1, 1]} : vector<16x384xf32> to vector<16x128xf32>
    %184 = arith.mulf %173, %183 : vector<16x128xf32>
    %185 = arith.addf %182, %184 : vector<16x128xf32>
    %186 = math.tanh %185 : vector<16x128xf32>
    %cst_45 = arith.constant 1.000000e+00 : f32
    %187 = vector.broadcast %cst_45 : f32 to vector<16x128xf32>
    %188 = arith.subf %187, %181 : vector<16x128xf32>
    %189 = arith.mulf %188, %186 : vector<16x128xf32>
    %190 = arith.mulf %181, %157 : vector<16x128xf32>
    %191 = arith.addf %189, %190 : vector<16x128xf32>
    %192 = arith.addi %8, %c4_i32 : i32
    %193 = arith.cmpi slt, %192, %7 : i32
    %194 = arith.select %193, %191, %157 : vector<16x128xf32>
    %c5_i32 = arith.constant 5 : i32
    %195 = arith.index_cast %c5_i32 : i32 to index
    %c0_46 = arith.constant 0 : index
    %c0_47 = arith.constant 0 : index
    %196 = vector.load %arg2[%195, %c0_46, %c0_47] : memref<8x16x128xbf16, #tpu.memory_space<vmem>>, vector<1x16x128xbf16>
    %197 = vector.shape_cast %196 : vector<1x16x128xbf16> to vector<16x128xbf16>
    %cst_48 = arith.constant dense<0.000000e+00> : vector<16x384xf32>
    %198 = tpu.matmul %197, %3, %cst_48 {dimension_numbers = #tpu.dot_dimension_numbers<[1], [0], [0], [1], [0, 0, 1, 1], [], []>} : vector<16x128xbf16>, vector<128x384xbf16>, vector<16x384xf32> -> vector<16x384xf32>
    %199 = arith.addf %198, %5 : vector<16x384xf32>
    %200 = arith.truncf %194 : vector<16x128xf32> to vector<16x128xbf16>
    %cst_49 = arith.constant dense<0.000000e+00> : vector<16x384xf32>
    %201 = tpu.matmul %200, %4, %cst_49 {dimension_numbers = #tpu.dot_dimension_numbers<[1], [0], [0], [1], [0, 0, 1, 1], [], []>} : vector<16x128xbf16>, vector<128x384xbf16>, vector<16x384xf32> -> vector<16x384xf32>
    %202 = arith.addf %201, %6 : vector<16x384xf32>
    %203 = vector.extract_strided_slice %199 {offsets = [0, 0], sizes = [16, 128], strides = [1, 1]} : vector<16x384xf32> to vector<16x128xf32>
    %204 = vector.extract_strided_slice %202 {offsets = [0, 0], sizes = [16, 128], strides = [1, 1]} : vector<16x384xf32> to vector<16x128xf32>
    %205 = arith.addf %203, %204 : vector<16x128xf32>
    %206 = arith.negf %205 : vector<16x128xf32>
    %207 = math.exp %206 : vector<16x128xf32>
    %cst_50 = arith.constant 1.000000e+00 : f32
    %208 = vector.broadcast %cst_50 : f32 to vector<16x128xf32>
    %209 = arith.addf %208, %207 : vector<16x128xf32>
    %210 = arith.divf %208, %209 : vector<16x128xf32>
    %211 = vector.extract_strided_slice %199 {offsets = [0, 128], sizes = [16, 128], strides = [1, 1]} : vector<16x384xf32> to vector<16x128xf32>
    %212 = vector.extract_strided_slice %202 {offsets = [0, 128], sizes = [16, 128], strides = [1, 1]} : vector<16x384xf32> to vector<16x128xf32>
    %213 = arith.addf %211, %212 : vector<16x128xf32>
    %214 = arith.negf %213 : vector<16x128xf32>
    %215 = math.exp %214 : vector<16x128xf32>
    %cst_51 = arith.constant 1.000000e+00 : f32
    %216 = vector.broadcast %cst_51 : f32 to vector<16x128xf32>
    %217 = arith.addf %216, %215 : vector<16x128xf32>
    %218 = arith.divf %216, %217 : vector<16x128xf32>
    %219 = vector.extract_strided_slice %199 {offsets = [0, 256], sizes = [16, 128], strides = [1, 1]} : vector<16x384xf32> to vector<16x128xf32>
    %220 = vector.extract_strided_slice %202 {offsets = [0, 256], sizes = [16, 128], strides = [1, 1]} : vector<16x384xf32> to vector<16x128xf32>
    %221 = arith.mulf %210, %220 : vector<16x128xf32>
    %222 = arith.addf %219, %221 : vector<16x128xf32>
    %223 = math.tanh %222 : vector<16x128xf32>
    %cst_52 = arith.constant 1.000000e+00 : f32
    %224 = vector.broadcast %cst_52 : f32 to vector<16x128xf32>
    %225 = arith.subf %224, %218 : vector<16x128xf32>
    %226 = arith.mulf %225, %223 : vector<16x128xf32>
    %227 = arith.mulf %218, %194 : vector<16x128xf32>
    %228 = arith.addf %226, %227 : vector<16x128xf32>
    %229 = arith.addi %8, %c5_i32 : i32
    %230 = arith.cmpi slt, %229, %7 : i32
    %231 = arith.select %230, %228, %194 : vector<16x128xf32>
    %c6_i32 = arith.constant 6 : i32
    %232 = arith.index_cast %c6_i32 : i32 to index
    %c0_53 = arith.constant 0 : index
    %c0_54 = arith.constant 0 : index
    %233 = vector.load %arg2[%232, %c0_53, %c0_54] : memref<8x16x128xbf16, #tpu.memory_space<vmem>>, vector<1x16x128xbf16>
    %234 = vector.shape_cast %233 : vector<1x16x128xbf16> to vector<16x128xbf16>
    %cst_55 = arith.constant dense<0.000000e+00> : vector<16x384xf32>
    %235 = tpu.matmul %234, %3, %cst_55 {dimension_numbers = #tpu.dot_dimension_numbers<[1], [0], [0], [1], [0, 0, 1, 1], [], []>} : vector<16x128xbf16>, vector<128x384xbf16>, vector<16x384xf32> -> vector<16x384xf32>
    %236 = arith.addf %235, %5 : vector<16x384xf32>
    %237 = arith.truncf %231 : vector<16x128xf32> to vector<16x128xbf16>
    %cst_56 = arith.constant dense<0.000000e+00> : vector<16x384xf32>
    %238 = tpu.matmul %237, %4, %cst_56 {dimension_numbers = #tpu.dot_dimension_numbers<[1], [0], [0], [1], [0, 0, 1, 1], [], []>} : vector<16x128xbf16>, vector<128x384xbf16>, vector<16x384xf32> -> vector<16x384xf32>
    %239 = arith.addf %238, %6 : vector<16x384xf32>
    %240 = vector.extract_strided_slice %236 {offsets = [0, 0], sizes = [16, 128], strides = [1, 1]} : vector<16x384xf32> to vector<16x128xf32>
    %241 = vector.extract_strided_slice %239 {offsets = [0, 0], sizes = [16, 128], strides = [1, 1]} : vector<16x384xf32> to vector<16x128xf32>
    %242 = arith.addf %240, %241 : vector<16x128xf32>
    %243 = arith.negf %242 : vector<16x128xf32>
    %244 = math.exp %243 : vector<16x128xf32>
    %cst_57 = arith.constant 1.000000e+00 : f32
    %245 = vector.broadcast %cst_57 : f32 to vector<16x128xf32>
    %246 = arith.addf %245, %244 : vector<16x128xf32>
    %247 = arith.divf %245, %246 : vector<16x128xf32>
    %248 = vector.extract_strided_slice %236 {offsets = [0, 128], sizes = [16, 128], strides = [1, 1]} : vector<16x384xf32> to vector<16x128xf32>
    %249 = vector.extract_strided_slice %239 {offsets = [0, 128], sizes = [16, 128], strides = [1, 1]} : vector<16x384xf32> to vector<16x128xf32>
    %250 = arith.addf %248, %249 : vector<16x128xf32>
    %251 = arith.negf %250 : vector<16x128xf32>
    %252 = math.exp %251 : vector<16x128xf32>
    %cst_58 = arith.constant 1.000000e+00 : f32
    %253 = vector.broadcast %cst_58 : f32 to vector<16x128xf32>
    %254 = arith.addf %253, %252 : vector<16x128xf32>
    %255 = arith.divf %253, %254 : vector<16x128xf32>
    %256 = vector.extract_strided_slice %236 {offsets = [0, 256], sizes = [16, 128], strides = [1, 1]} : vector<16x384xf32> to vector<16x128xf32>
    %257 = vector.extract_strided_slice %239 {offsets = [0, 256], sizes = [16, 128], strides = [1, 1]} : vector<16x384xf32> to vector<16x128xf32>
    %258 = arith.mulf %247, %257 : vector<16x128xf32>
    %259 = arith.addf %256, %258 : vector<16x128xf32>
    %260 = math.tanh %259 : vector<16x128xf32>
    %cst_59 = arith.constant 1.000000e+00 : f32
    %261 = vector.broadcast %cst_59 : f32 to vector<16x128xf32>
    %262 = arith.subf %261, %255 : vector<16x128xf32>
    %263 = arith.mulf %262, %260 : vector<16x128xf32>
    %264 = arith.mulf %255, %231 : vector<16x128xf32>
    %265 = arith.addf %263, %264 : vector<16x128xf32>
    %266 = arith.addi %8, %c6_i32 : i32
    %267 = arith.cmpi slt, %266, %7 : i32
    %268 = arith.select %267, %265, %231 : vector<16x128xf32>
    %c7_i32 = arith.constant 7 : i32
    %269 = arith.index_cast %c7_i32 : i32 to index
    %c0_60 = arith.constant 0 : index
    %c0_61 = arith.constant 0 : index
    %270 = vector.load %arg2[%269, %c0_60, %c0_61] : memref<8x16x128xbf16, #tpu.memory_space<vmem>>, vector<1x16x128xbf16>
    %271 = vector.shape_cast %270 : vector<1x16x128xbf16> to vector<16x128xbf16>
    %cst_62 = arith.constant dense<0.000000e+00> : vector<16x384xf32>
    %272 = tpu.matmul %271, %3, %cst_62 {dimension_numbers = #tpu.dot_dimension_numbers<[1], [0], [0], [1], [0, 0, 1, 1], [], []>} : vector<16x128xbf16>, vector<128x384xbf16>, vector<16x384xf32> -> vector<16x384xf32>
    %273 = arith.addf %272, %5 : vector<16x384xf32>
    %274 = arith.truncf %268 : vector<16x128xf32> to vector<16x128xbf16>
    %cst_63 = arith.constant dense<0.000000e+00> : vector<16x384xf32>
    %275 = tpu.matmul %274, %4, %cst_63 {dimension_numbers = #tpu.dot_dimension_numbers<[1], [0], [0], [1], [0, 0, 1, 1], [], []>} : vector<16x128xbf16>, vector<128x384xbf16>, vector<16x384xf32> -> vector<16x384xf32>
    %276 = arith.addf %275, %6 : vector<16x384xf32>
    %277 = vector.extract_strided_slice %273 {offsets = [0, 0], sizes = [16, 128], strides = [1, 1]} : vector<16x384xf32> to vector<16x128xf32>
    %278 = vector.extract_strided_slice %276 {offsets = [0, 0], sizes = [16, 128], strides = [1, 1]} : vector<16x384xf32> to vector<16x128xf32>
    %279 = arith.addf %277, %278 : vector<16x128xf32>
    %280 = arith.negf %279 : vector<16x128xf32>
    %281 = math.exp %280 : vector<16x128xf32>
    %cst_64 = arith.constant 1.000000e+00 : f32
    %282 = vector.broadcast %cst_64 : f32 to vector<16x128xf32>
    %283 = arith.addf %282, %281 : vector<16x128xf32>
    %284 = arith.divf %282, %283 : vector<16x128xf32>
    %285 = vector.extract_strided_slice %273 {offsets = [0, 128], sizes = [16, 128], strides = [1, 1]} : vector<16x384xf32> to vector<16x128xf32>
    %286 = vector.extract_strided_slice %276 {offsets = [0, 128], sizes = [16, 128], strides = [1, 1]} : vector<16x384xf32> to vector<16x128xf32>
    %287 = arith.addf %285, %286 : vector<16x128xf32>
    %288 = arith.negf %287 : vector<16x128xf32>
    %289 = math.exp %288 : vector<16x128xf32>
    %cst_65 = arith.constant 1.000000e+00 : f32
    %290 = vector.broadcast %cst_65 : f32 to vector<16x128xf32>
    %291 = arith.addf %290, %289 : vector<16x128xf32>
    %292 = arith.divf %290, %291 : vector<16x128xf32>
    %293 = vector.extract_strided_slice %273 {offsets = [0, 256], sizes = [16, 128], strides = [1, 1]} : vector<16x384xf32> to vector<16x128xf32>
    %294 = vector.extract_strided_slice %276 {offsets = [0, 256], sizes = [16, 128], strides = [1, 1]} : vector<16x384xf32> to vector<16x128xf32>
    %295 = arith.mulf %284, %294 : vector<16x128xf32>
    %296 = arith.addf %293, %295 : vector<16x128xf32>
    %297 = math.tanh %296 : vector<16x128xf32>
    %cst_66 = arith.constant 1.000000e+00 : f32
    %298 = vector.broadcast %cst_66 : f32 to vector<16x128xf32>
    %299 = arith.subf %298, %292 : vector<16x128xf32>
    %300 = arith.mulf %299, %297 : vector<16x128xf32>
    %301 = arith.mulf %292, %268 : vector<16x128xf32>
    %302 = arith.addf %300, %301 : vector<16x128xf32>
    %303 = arith.addi %8, %c7_i32 : i32
    %304 = arith.cmpi slt, %303, %7 : i32
    %305 = arith.select %304, %302, %268 : vector<16x128xf32>
    %c8_i32_67 = arith.constant 8 : i32
    %c0_68 = arith.constant 0 : index
    %c0_69 = arith.constant 0 : index
    %306 = vector.load %arg7[%c0_68, %c0_69] : memref<16x128xf32, #tpu.memory_space<vmem>>, vector<16x128xf32>
    tpu.vector_store %arg7[%c0_68, %c0_69], %305 {strides = array<i32>} : memref<16x128xf32, #tpu.memory_space<vmem>>, vector<16x128xf32>,
    return
  }
  func.func @transform_0(%arg0: i32, %arg1: memref<1xi32, #tpu.memory_space<smem>>) -> (i32, i32, i32) {
    %c0_i32 = arith.constant 0 : i32
    %c0_i32_0 = arith.constant 0 : i32
    %c0_i32_1 = arith.constant 0 : i32
    return %arg0, %c0_i32, %c0_i32_0 : i32, i32, i32
  }
  func.func @transform_1(%arg0: i32, %arg1: memref<1xi32, #tpu.memory_space<smem>>) -> (i32, i32) {
    %c0_i32 = arith.constant 0 : i32
    %c0_i32_0 = arith.constant 0 : i32
    %c0_i32_1 = arith.constant 0 : i32
    return %c0_i32, %c0_i32_0 : i32, i32
  }
  func.func @transform_2(%arg0: i32, %arg1: memref<1xi32, #tpu.memory_space<smem>>) -> (i32, i32) {
    %c0_i32 = arith.constant 0 : i32
    %c0_i32_0 = arith.constant 0 : i32
    %c0_i32_1 = arith.constant 0 : i32
    return %c0_i32, %c0_i32_0 : i32, i32
  }
  func.func @transform_3(%arg0: i32, %arg1: memref<1xi32, #tpu.memory_space<smem>>) -> (i32, i32) {
    %c0_i32 = arith.constant 0 : i32
    %c0_i32_0 = arith.constant 0 : i32
    %c0_i32_1 = arith.constant 0 : i32
    return %c0_i32, %c0_i32_0 : i32, i32
  }
  func.func @transform_4(%arg0: i32, %arg1: memref<1xi32, #tpu.memory_space<smem>>) -> (i32, i32) {
    %c0_i32 = arith.constant 0 : i32
    %c0_i32_0 = arith.constant 0 : i32
    %c0_i32_1 = arith.constant 0 : i32
    return %c0_i32, %c0_i32_0 : i32, i32
  }
  func.func @transform_5(%arg0: i32, %arg1: memref<1xi32, #tpu.memory_space<smem>>) -> (i32, i32) {
    %c0_i32 = arith.constant 0 : i32
    %c0_i32_0 = arith.constant 0 : i32
    %c0_i32_1 = arith.constant 0 : i32
    return %c0_i32, %c0_i32_0 : i32, i32
  }
}

</mosaic_0001>

<llo_original>
// kernel: tpu_custom_call.1
$region0: #{tpu_custom_call.1}
  #allocation0 [shape = 'u32[]', space=smem, size = 0x4, offset = 0x4, fixed_abs, tag = 'smem constant byte address 0x4 - core index']
  #allocation1 [shape = 'u32[72,128]{1,0:T(1,128)}', space=vmem, size = 0x9000, scoped, tag = 'internal scratch']
  #allocation2 [shape = 's32[1]{0}', space=sflag, size = 0x4, scoped, tag = 'scoped memory for tpu_custom_call.1']
  #allocation3 [shape = 's32[1]{0:T(128)S(6)}', space=smem, size = 0x200, scoped, tag = 'prefetched SMEM operand 0']
  %s0 = inlined_call_operand.<no memory space> [shape: s32[1], index: 0, kind: input, shape index: {}]
  %s1 = inlined_call_operand.hbm [shape: bf16[8,16,128], index: 1, kind: input, shape index: {}]
  %s2 = inlined_call_operand.hbm [shape: bf16[128,384], index: 2, kind: input, shape index: {}]
  %s3 = inlined_call_operand.hbm [shape: bf16[128,384], index: 3, kind: input, shape index: {}]
  %s4 = inlined_call_operand.hbm [shape: f32[16,384], index: 4, kind: input, shape index: {}]
  %s5 = inlined_call_operand.hbm [shape: f32[16,384], index: 5, kind: input, shape index: {}]
  %s6 = inlined_call_operand.hbm [shape: f32[16,128], index: 6, kind: output, shape index: {}]
  %s7 = sld [smem:[#allocation0]]
  $region54: #{tpu_custom_call.1} parent=0
    _
  %s9 = ssub.s32 1, %s7
  %s10 = scalar_select 0, %s9, %s7
  %11 = sst [smem:[#allocation3]] %s0
  $region1: #{tpu_custom_call.1} parent=0
    #allocation4 [shape = 'u8[32768]{0}', space=vmem, size = 0x8000, scoped, tag = 'input window, operand 1, single buffered']
    #allocation5 [shape = 's32[1]{0}', space=sflag, size = 0x4, scoped, tag = 'scoped memory for tpu_custom_call.1']
    #allocation6 [shape = 's32[1]{0}', space=sflag, size = 0x4, scoped, tag = 'scoped memory for tpu_custom_call.1']
    #allocation7 [shape = 'u8[98304]{0}', space=vmem, size = 0x18000, scoped, tag = 'input window, operand 2, single buffered']
    #allocation8 [shape = 's32[1]{0}', space=sflag, size = 0x4, scoped, tag = 'scoped memory for tpu_custom_call.1']
    #allocation9 [shape = 'u8[98304]{0}', space=vmem, size = 0x18000, scoped, tag = 'input window, operand 3, single buffered']
    #allocation10 [shape = 'u8[24576]{0}', space=vmem, size = 0x6000, scoped, tag = 'input window, operand 4, single buffered']
    #allocation11 [shape = 's32[1]{0}', space=sflag, size = 0x4, scoped, tag = 'scoped memory for tpu_custom_call.1']
    #allocation12 [shape = 'u8[24576]{0}', space=vmem, size = 0x6000, scoped, tag = 'input window, operand 5, single buffered']
    #allocation13 [shape = 'u8[8192]{0}', space=vmem, size = 0x2000, scoped, tag = 'output window, operand 0, single buffered']
    %12 = vsyncpa [#allocation5], 0
    %13 = vsyncpa [#allocation8], 0
    %14 = vsyncpa [#allocation11], 0
    %15 = vsyncpa [#allocation6], 0
    // Predicated region
    $region2: #{tpu_custom_call.1} parent=1 // pred_check
      _
    $region3: #{tpu_custom_call.1} parent=1 // pred_check_branch
      %17 = sbr.rel (0) target = $region5
    $region4: #{tpu_custom_call.1} parent=1 // pred_region
      %19 = vsyncadd [#allocation5], 0
      %s20 = sshll.u32 %s1, 4
      %s21 = int_to_ptr.hbm [resolvable:$true] %s20
      %s22 = sshll.u32 [#allocation4], 4
      %s23 = int_to_ptr.vmem [resolvable:$true] %s22
      %28 = dma.hbm_to_vmem [thread:$0]  %s21, 1024, %s23, [#allocation5], 64, 64, 4
    $region5: #{tpu_custom_call.1} parent=1 // pred_fallthru
      _
    // Predicated region
    $region6: #{tpu_custom_call.1} parent=1 // pred_check
      _
    $region7: #{tpu_custom_call.1} parent=1 // pred_check_branch
      %30 = sbr.rel (0) target = $region9
    $region8: #{tpu_custom_call.1} parent=1 // pred_region
      %32 = vsyncadd [#allocation8], 0
      %s33 = sshll.u32 %s2, 4
      %s34 = int_to_ptr.hbm [resolvable:$true] %s33
      %s35 = sshll.u32 [#allocation7], 4
      %s36 = int_to_ptr.vmem [resolvable:$true] %s35
      %41 = dma.hbm_to_vmem [thread:$0]  %s34, 3072, %s36, [#allocation8], 192, 192, 12
    $region9: #{tpu_custom_call.1} parent=1 // pred_fallthru
      _
    // Predicated region
    $region10: #{tpu_custom_call.1} parent=1 // pred_check
      _
    $region11: #{tpu_custom_call.1} parent=1 // pred_check_branch
      %43 = sbr.rel (0) target = $region13
    $region12: #{tpu_custom_call.1} parent=1 // pred_region
      %45 = vsyncadd [#allocation8], 0
      %s46 = sshll.u32 %s3, 4
      %s47 = int_to_ptr.hbm [resolvable:$true] %s46
      %s48 = sshll.u32 [#allocation9], 4
      %s49 = int_to_ptr.vmem [resolvable:$true] %s48
      %54 = dma.hbm_to_vmem [thread:$0]  %s47, 3072, %s49, [#allocation8], 192, 192, 12
    $region13: #{tpu_custom_call.1} parent=1 // pred_fallthru
      _
    // Predicated region
    $region14: #{tpu_custom_call.1} parent=1 // pred_check
      _
    $region15: #{tpu_custom_call.1} parent=1 // pred_check_branch
      %56 = sbr.rel (0) target = $region17
    $region16: #{tpu_custom_call.1} parent=1 // pred_region
      %58 = vsyncadd [#allocation11], 0
      %s59 = sshll.u32 %s4, 4
      %s60 = int_to_ptr.hbm [resolvable:$true] %s59
      %s61 = sshll.u32 [#allocation10], 4
      %s62 = int_to_ptr.vmem [resolvable:$true] %s61
      %67 = dma.hbm_to_vmem [thread:$0]  %s60, 768, %s62, [#allocation11], 384, 384, 24
    $region17: #{tpu_custom_call.1} parent=1 // pred_fallthru
      _
    // Predicated region
    $region18: #{tpu_custom_call.1} parent=1 // pred_check
      _
    $region19: #{tpu_custom_call.1} parent=1 // pred_check_branch
      %69 = sbr.rel (0) target = $region21
    $region20: #{tpu_custom_call.1} parent=1 // pred_region
      %71 = vsyncadd [#allocation11], 0
      %s72 = sshll.u32 %s5, 4
      %s73 = int_to_ptr.hbm [resolvable:$true] %s72
      %s74 = sshll.u32 [#allocation12], 4
      %s75 = int_to_ptr.vmem [resolvable:$true] %s74
      %80 = dma.hbm_to_vmem [thread:$0]  %s73, 768, %s75, [#allocation11], 384, 384, 24
    $region21: #{tpu_custom_call.1} parent=1 // pred_fallthru
      _
    // Predicated region
    $region22: #{tpu_custom_call.1} parent=1 // pred_check
      _
    $region23: #{tpu_custom_call.1} parent=1 // pred_check_branch
      %82 = sbr.rel (0) target = $region25
    $region24: #{tpu_custom_call.1} parent=1 // pred_region
      %84 = dma.done [#allocation5], 1024
    $region25: #{tpu_custom_call.1} parent=1 // pred_fallthru
      _
    // Predicated region
    $region26: #{tpu_custom_call.1} parent=1 // pred_check
      _
    $region27: #{tpu_custom_call.1} parent=1 // pred_check_branch
      %86 = sbr.rel (0) target = $region29
    $region28: #{tpu_custom_call.1} parent=1 // pred_region
      %88 = dma.done [#allocation8], 3072
    $region29: #{tpu_custom_call.1} parent=1 // pred_fallthru
      _
    // Predicated region
    $region30: #{tpu_custom_call.1} parent=1 // pred_check
      _
    $region31: #{tpu_custom_call.1} parent=1 // pred_check_branch
      %90 = sbr.rel (0) target = $region33
    $region32: #{tpu_custom_call.1} parent=1 // pred_region
      %92 = dma.done [#allocation8], 3072
    $region33: #{tpu_custom_call.1} parent=1 // pred_fallthru
      _
    // Predicated region
    $region34: #{tpu_custom_call.1} parent=1 // pred_check
      _
    $region35: #{tpu_custom_call.1} parent=1 // pred_check_branch
      %94 = sbr.rel (0) target = $region37
    $region36: #{tpu_custom_call.1} parent=1 // pred_region
      %96 = dma.done [#allocation11], 768
    $region37: #{tpu_custom_call.1} parent=1 // pred_fallthru
      _
    // Predicated region
    $region38: #{tpu_custom_call.1} parent=1 // pred_check
      _
    $region39: #{tpu_custom_call.1} parent=1 // pred_check_branch
      %98 = sbr.rel (0) target = $region41
    $region40: #{tpu_custom_call.1} parent=1 // pred_region
      %100 = dma.done [#allocation11], 768
    $region41: #{tpu_custom_call.1} parent=1 // pred_fallthru
      _
    %p101 = scmp.eq.s32.totalorder 0, 0
    // Predicated region
    $region42: #{tpu_custom_call.1} parent=1 // pred_check
      %p102 = pneg %p101
    $region43: #{tpu_custom_call.1} parent=1 // pred_check_branch
      %104 = sbr.rel (%p102) target = $region45
    $region44: #{tpu_custom_call.1} parent=1 // pred_region
      %105 = vst [vmem:[#allocation13] sm:$0xff] 0.0
      %106 = vst [vmem:[#allocation13 + $0x8] sm:$0xff] 0.0
    $region45: #{tpu_custom_call.1} parent=1 // pred_fallthru
      _
    %v107 = vld [vmem:[#allocation7] sm:$0xff]
    %v108 = vld [vmem:[#allocation7 + $0x8] sm:$0xf]
    %v109 = vld [vmem:[#allocation7 + $0xc] sm:$0xff]
    %v110 = vld [vmem:[#allocation7 + $0x14] sm:$0xf]
    %v111 = vld [vmem:[#allocation7 + $0x18] sm:$0xff]
    %v112 = vld [vmem:[#allocation7 + $0x20] sm:$0xf]
    %v113 = vld [vmem:[#allocation7 + $0x24] sm:$0xff]
    %v114 = vld [vmem:[#allocation7 + $0x2c] sm:$0xf]
    %v115 = vld [vmem:[#allocation7 + $0x30] sm:$0xff]
    %v116 = vld [vmem:[#allocation7 + $0x38] sm:$0xf]
    %v117 = vld [vmem:[#allocation7 + $0x3c] sm:$0xff]
    %v118 = vld [vmem:[#allocation7 + $0x44] sm:$0xf]
    %v119 = vld [vmem:[#allocation7 + $0x48] sm:$0xff]
    %v120 = vld [vmem:[#allocation7 + $0x50] sm:$0xf]
    %v121 = vld [vmem:[#allocation7 + $0x54] sm:$0xff]
    %v122 = vld [vmem:[#allocation7 + $0x5c] sm:$0xf]
    %v123 = vld [vmem:[#allocation7 + $0x60] sm:$0xff]
    %v124 = vld [vmem:[#allocation7 + $0x68] sm:$0xf]
    %v125 = vld [vmem:[#allocation7 + $0x6c] sm:$0xff]
    %v126 = vld [vmem:[#allocation7 + $0x74] sm:$0xf]
    %v127 = vld [vmem:[#allocation7 + $0x78] sm:$0xff]
    %v128 = vld [vmem:[#allocation7 + $0x80] sm:$0xf]
    %v129 = vld [vmem:[#allocation7 + $0x84] sm:$0xff]
    %v130 = vld [vmem:[#allocation7 + $0x8c] sm:$0xf]
    %v131 = vld [vmem:[#allocation7 + $0x90] sm:$0xff]
    %v132 = vld [vmem:[#allocation7 + $0x98] sm:$0xf]
    %v133 = vld [vmem:[#allocation7 + $0x9c] sm:$0xff]
    %v134 = vld [vmem:[#allocation7 + $0xa4] sm:$0xf]
    %v135 = vld [vmem:[#allocation7 + $0xa8] sm:$0xff]
    %v136 = vld [vmem:[#allocation7 + $0xb0] sm:$0xf]
    %v137 = vld [vmem:[#allocation7 + $0xb4] sm:$0xff]
    %v138 = vld [vmem:[#allocation7 + $0xbc] sm:$0xf]
    %v139 = vld [vmem:[#allocation9] sm:$0xff]
    %v140 = vld [vmem:[#allocation9 + $0x8] sm:$0xf]
    %v141 = vld [vmem:[#allocation9 + $0xc] sm:$0xff]
    %v142 = vld [vmem:[#allocation9 + $0x14] sm:$0xf]
    %v143 = vld [vmem:[#allocation9 + $0x18] sm:$0xff]
    %v144 = vld [vmem:[#allocation9 + $0x20] sm:$0xf]
    %v145 = vld [vmem:[#allocation9 + $0x24] sm:$0xff]
    %v146 = vld [vmem:[#allocation9 + $0x2c] sm:$0xf]
    %v147 = vld [vmem:[#allocation9 + $0x30] sm:$0xff]
    %v148 = vld [vmem:[#allocation9 + $0x38] sm:$0xf]
    %v149 = vld [vmem:[#allocation9 + $0x3c] sm:$0xff]
    %v150 = vld [vmem:[#allocation9 + $0x44] sm:$0xf]
    %v151 = vld [vmem:[#allocation9 + $0x48] sm:$0xff]
    %v152 = vld [vmem:[#allocation9 + $0x50] sm:$0xf]
    %v153 = vld [vmem:[#allocation9 + $0x54] sm:$0xff]
    %v154 = vld [vmem:[#allocation9 + $0x5c] sm:$0xf]
    %v155 = vld [vmem:[#allocation9 + $0x60] sm:$0xff]
    %v156 = vld [vmem:[#allocation9 + $0x68] sm:$0xf]
    %v157 = vld [vmem:[#allocation9 + $0x6c] sm:$0xff]
    %v158 = vld [vmem:[#allocation9 + $0x74] sm:$0xf]
    %v159 = vld [vmem:[#allocation9 + $0x78] sm:$0xff]
    %v160 = vld [vmem:[#allocation9 + $0x80] sm:$0xf]
    %v161 = vld [vmem:[#allocation9 + $0x84] sm:$0xff]
    %v162 = vld [vmem:[#allocation9 + $0x8c] sm:$0xf]
    %v163 = vld [vmem:[#allocation9 + $0x90] sm:$0xff]
    %v164 = vld [vmem:[#allocation9 + $0x98] sm:$0xf]
    %v165 = vld [vmem:[#allocation9 + $0x9c] sm:$0xff]
    %v166 = vld [vmem:[#allocation9 + $0xa4] sm:$0xf]
    %v167 = vld [vmem:[#allocation9 + $0xa8] sm:$0xff]
    %v168 = vld [vmem:[#allocation9 + $0xb0] sm:$0xf]
    %v169 = vld [vmem:[#allocation9 + $0xb4] sm:$0xff]
    %v170 = vld [vmem:[#allocation9 + $0xbc] sm:$0xf]
    %v171 = vld [vmem:[#allocation10] sm:$0xff]
    %v172 = vld [vmem:[#allocation10 + $0x8] sm:$0xff]
    %v173 = vld [vmem:[#allocation10 + $0x10] sm:$0xff]
    %v174 = vld [vmem:[#allocation10 + $0x18] sm:$0xff]
    %v175 = vld [vmem:[#allocation10 + $0x20] sm:$0xff]
    %v176 = vld [vmem:[#allocation10 + $0x28] sm:$0xff]
    %v177 = vld [vmem:[#allocation12] sm:$0xff]
    %v178 = vld [vmem:[#allocation12 + $0x8] sm:$0xff]
    %v179 = vld [vmem:[#allocation12 + $0x10] sm:$0xff]
    %v180 = vld [vmem:[#allocation12 + $0x18] sm:$0xff]
    %v181 = vld [vmem:[#allocation12 + $0x20] sm:$0xff]
    %v182 = vld [vmem:[#allocation12 + $0x28] sm:$0xff]
    %s183 = sld [smem:[#allocation3]]
    %s184 = smul.u32 0, 8
    %v185 = vld [vmem:[#allocation13] sm:$0xff]
    %v186 = vld [vmem:[#allocation13 + $0x8] sm:$0xff]
    %v187 = vld [vmem:[#allocation4] sm:$0xf]
    %v188 = vld [vmem:[#allocation4 + $0x4] sm:$0xf]
    %v191 = vunpack.c.l.b16 %v187
    %v192 = vunpack.c.l.b16 %v188
    %v193 = vpack.c.b16 %v192, %v191
    %v227 = vunpack.c.l.b16 %v107
    %v228 = vunpack.c.h.b16 %v107
    %v229 = vunpack.c.l.b16 %v108
    %v230 = vunpack.c.l.b16 %v109
    %v231 = vunpack.c.h.b16 %v109
    %v232 = vunpack.c.l.b16 %v110
    %v233 = vunpack.c.l.b16 %v111
    %v234 = vunpack.c.h.b16 %v111
    %v235 = vunpack.c.l.b16 %v112
    %v236 = vunpack.c.l.b16 %v113
    %v237 = vunpack.c.h.b16 %v113
    %v238 = vunpack.c.l.b16 %v114
    %v239 = vunpack.c.l.b16 %v115
    %v240 = vunpack.c.h.b16 %v115
    %v241 = vunpack.c.l.b16 %v116
    %v242 = vunpack.c.l.b16 %v117
    %v243 = vunpack.c.h.b16 %v117
    %v244 = vunpack.c.l.b16 %v118
    %v245 = vunpack.c.l.b16 %v119
    %v246 = vunpack.c.h.b16 %v119
    %v247 = vunpack.c.l.b16 %v120
    %v248 = vunpack.c.l.b16 %v121
    %v249 = vunpack.c.h.b16 %v121
    %v250 = vunpack.c.l.b16 %v122
    %v251 = vunpack.c.l.b16 %v123
    %v252 = vunpack.c.h.b16 %v123
    %v253 = vunpack.c.l.b16 %v124
    %v254 = vunpack.c.l.b16 %v125
    %v255 = vunpack.c.h.b16 %v125
    %v256 = vunpack.c.l.b16 %v126
    %v257 = vunpack.c.l.b16 %v127
    %v258 = vunpack.c.h.b16 %v127
    %v259 = vunpack.c.l.b16 %v128
    %v260 = vunpack.c.l.b16 %v129
    %v261 = vunpack.c.h.b16 %v129
    %v262 = vunpack.c.l.b16 %v130
    %v263 = vunpack.c.l.b16 %v131
    %v264 = vunpack.c.h.b16 %v131
    %v265 = vunpack.c.l.b16 %v132
    %v266 = vunpack.c.l.b16 %v133
    %v267 = vunpack.c.h.b16 %v133
    %v268 = vunpack.c.l.b16 %v134
    %v269 = vunpack.c.l.b16 %v135
    %v270 = vunpack.c.h.b16 %v135
    %v271 = vunpack.c.l.b16 %v136
    %v272 = vunpack.c.l.b16 %v137
    %v273 = vunpack.c.h.b16 %v137
    %v274 = vunpack.c.l.b16 %v138
    %v275 = vpack.c.b16 %v230, %v227
    %v276 = vpack.c.b16 %v231, %v228
    %v277 = vpack.c.b16 %v232, %v229
    %v278 = vpack.c.b16 %v236, %v233
    %v279 = vpack.c.b16 %v237, %v234
    %v280 = vpack.c.b16 %v238, %v235
    %v281 = vpack.c.b16 %v242, %v239
    %v282 = vpack.c.b16 %v243, %v240
    %v283 = vpack.c.b16 %v244, %v241
    %v284 = vpack.c.b16 %v248, %v245
    %v285 = vpack.c.b16 %v249, %v246
    %v286 = vpack.c.b16 %v250, %v247
    %v287 = vpack.c.b16 %v254, %v251
    %v288 = vpack.c.b16 %v255, %v252
    %v289 = vpack.c.b16 %v256, %v253
    %v290 = vpack.c.b16 %v260, %v257
    %v291 = vpack.c.b16 %v261, %v258
    %v292 = vpack.c.b16 %v262, %v259
    %v293 = vpack.c.b16 %v266, %v263
    %v294 = vpack.c.b16 %v267, %v264
    %v295 = vpack.c.b16 %v268, %v265
    %v296 = vpack.c.b16 %v272, %v269
    %v297 = vpack.c.b16 %v273, %v270
    %v298 = vpack.c.b16 %v274, %v271
    %323 = vmatpush.bf16.msra.mxu0 %v296
    %324 = vmatpush.bf16.msra.mxu0 %v293
    %325 = vmatpush.bf16.msra.mxu0 %v290
    %326 = vmatpush.bf16.msra.mxu0 %v287
    %327 = vmatpush.bf16.msra.mxu0 %v284
    %328 = vmatpush.bf16.msra.mxu0 %v281
    %329 = vmatpush.bf16.msra.mxu0 %v278
    %330 = vmatpush.bf16.msra.mxu0 %v275
    %331 = vmatmul.bf16.gmra.mxu0 %v193
    %v332 = vpop.f32.mrf.mxu0
    %v333 = vadd.f32 %v171, %v332
    %v334 = vpop.f32.mrf.mxu0
    %v335 = vadd.f32 %v174, %v334
    %336 = vdwg.mxu0
    %337 = vmatpush.bf16.msra.mxu0 %v297
    %338 = vmatpush.bf16.msra.mxu0 %v294
    %339 = vmatpush.bf16.msra.mxu0 %v291
    %340 = vmatpush.bf16.msra.mxu0 %v288
    %341 = vmatpush.bf16.msra.mxu0 %v285
    %342 = vmatpush.bf16.msra.mxu0 %v282
    %343 = vmatpush.bf16.msra.mxu0 %v279
    %344 = vmatpush.bf16.msra.mxu0 %v276
    %345 = vmatmul.bf16.gmra.mxu0 %v193
    %v346 = vpop.f32.mrf.mxu0
    %v347 = vadd.f32 %v172, %v346
    %v348 = vpop.f32.mrf.mxu0
    %v349 = vadd.f32 %v175, %v348
    %350 = vdwg.mxu0
    %351 = vmatpush.bf16.msra.mxu0 %v298
    %352 = vmatpush.bf16.msra.mxu0 %v295
    %353 = vmatpush.bf16.msra.mxu0 %v292
    %354 = vmatpush.bf16.msra.mxu0 %v289
    %355 = vmatpush.bf16.msra.mxu0 %v286
    %356 = vmatpush.bf16.msra.mxu0 %v283
    %357 = vmatpush.bf16.msra.mxu0 %v280
    %358 = vmatpush.bf16.msra.mxu0 %v277
    %359 = vmatmul.bf16.gmra.mxu0 %v193
    %v360 = vpop.f32.mrf.mxu0
    %v361 = vadd.f32 %v173, %v360
    %v362 = vpop.f32.mrf.mxu0
    %v363 = vadd.f32 %v176, %v362
    %364 = vdwg.mxu0
    %v365 = vpack.c.bf16 %v186, %v185
    %v398 = vunpack.c.l.b16 %v139
    %v399 = vunpack.c.h.b16 %v139
    %v400 = vunpack.c.l.b16 %v140
    %v401 = vunpack.c.l.b16 %v141
    %v402 = vunpack.c.h.b16 %v141
    %v403 = vunpack.c.l.b16 %v142
    %v404 = vunpack.c.l.b16 %v143
    %v405 = vunpack.c.h.b16 %v143
    %v406 = vunpack.c.l.b16 %v144
    %v407 = vunpack.c.l.b16 %v145
    %v408 = vunpack.c.h.b16 %v145
    %v409 = vunpack.c.l.b16 %v146
    %v410 = vunpack.c.l.b16 %v147
    %v411 = vunpack.c.h.b16 %v147
    %v412 = vunpack.c.l.b16 %v148
    %v413 = vunpack.c.l.b16 %v149
    %v414 = vunpack.c.h.b16 %v149
    %v415 = vunpack.c.l.b16 %v150
    %v416 = vunpack.c.l.b16 %v151
    %v417 = vunpack.c.h.b16 %v151
    %v418 = vunpack.c.l.b16 %v152
    %v419 = vunpack.c.l.b16 %v153
    %v420 = vunpack.c.h.b16 %v153
    %v421 = vunpack.c.l.b16 %v154
    %v422 = vunpack.c.l.b16 %v155
    %v423 = vunpack.c.h.b16 %v155
    %v424 = vunpack.c.l.b16 %v156
    %v425 = vunpack.c.l.b16 %v157
    %v426 = vunpack.c.h.b16 %v157
    %v427 = vunpack.c.l.b16 %v158
    %v428 = vunpack.c.l.b16 %v159
    %v429 = vunpack.c.h.b16 %v159
    %v430 = vunpack.c.l.b16 %v160
    %v431 = vunpack.c.l.b16 %v161
    %v432 = vunpack.c.h.b16 %v161
    %v433 = vunpack.c.l.b16 %v162
    %v434 = vunpack.c.l.b16 %v163
    %v435 = vunpack.c.h.b16 %v163
    %v436 = vunpack.c.l.b16 %v164
    %v437 = vunpack.c.l.b16 %v165
    %v438 = vunpack.c.h.b16 %v165
    %v439 = vunpack.c.l.b16 %v166
    %v440 = vunpack.c.l.b16 %v167
    %v441 = vunpack.c.h.b16 %v167
    %v442 = vunpack.c.l.b16 %v168
    %v443 = vunpack.c.l.b16 %v169
    %v444 = vunpack.c.h.b16 %v169
    %v445 = vunpack.c.l.b16 %v170
    %v446 = vpack.c.b16 %v401, %v398
    %v447 = vpack.c.b16 %v402, %v399
    %v448 = vpack.c.b16 %v403, %v400
    %v449 = vpack.c.b16 %v407, %v404
    %v450 = vpack.c.b16 %v408, %v405
    %v451 = vpack.c.b16 %v409, %v406
    %v452 = vpack.c.b16 %v413, %v410
    %v453 = vpack.c.b16 %v414, %v411
    %v454 = vpack.c.b16 %v415, %v412
    %v455 = vpack.c.b16 %v419, %v416
    %v456 = vpack.c.b16 %v420, %v417
    %v457 = vpack.c.b16 %v421, %v418
    %v458 = vpack.c.b16 %v425, %v422
    %v459 = vpack.c.b16 %v426, %v423
    %v460 = vpack.c.b16 %v427, %v424
    %v461 = vpack.c.b16 %v431, %v428
    %v462 = vpack.c.b16 %v432, %v429
    %v463 = vpack.c.b16 %v433, %v430
    %v464 = vpack.c.b16 %v437, %v434
    %v465 = vpack.c.b16 %v438, %v435
    %v466 = vpack.c.b16 %v439, %v436
    %v467 = vpack.c.b16 %v443, %v440
    %v468 = vpack.c.b16 %v444, %v441
    %v469 = vpack.c.b16 %v445, %v442
    %494 = vmatpush.bf16.msra.mxu0 %v467
    %495 = vmatpush.bf16.msra.mxu0 %v464
    %496 = vmatpush.bf16.msra.mxu0 %v461
    %497 = vmatpush.bf16.msra.mxu0 %v458
    %498 = vmatpush.bf16.msra.mxu0 %v455
    %499 = vmatpush.bf16.msra.mxu0 %v452
    %500 = vmatpush.bf16.msra.mxu0 %v449
    %501 = vmatpush.bf16.msra.mxu0 %v446
    %502 = vmatmul.bf16.gmra.mxu0 %v365
    %v503 = vpop.f32.mrf.mxu0
    %v504 = vadd.f32 %v177, %v503
    %v505 = vpop.f32.mrf.mxu0
    %v506 = vadd.f32 %v180, %v505
    %507 = vdwg.mxu0
    %508 = vmatpush.bf16.msra.mxu0 %v468
    %509 = vmatpush.bf16.msra.mxu0 %v465
    %510 = vmatpush.bf16.msra.mxu0 %v462
    %511 = vmatpush.bf16.msra.mxu0 %v459
    %512 = vmatpush.bf16.msra.mxu0 %v456
    %513 = vmatpush.bf16.msra.mxu0 %v453
    %514 = vmatpush.bf16.msra.mxu0 %v450
    %515 = vmatpush.bf16.msra.mxu0 %v447
    %516 = vmatmul.bf16.gmra.mxu0 %v365
    %v517 = vpop.f32.mrf.mxu0
    %v518 = vadd.f32 %v178, %v517
    %v519 = vpop.f32.mrf.mxu0
    %v520 = vadd.f32 %v181, %v519
    %521 = vdwg.mxu0
    %522 = vmatpush.bf16.msra.mxu0 %v469
    %523 = vmatpush.bf16.msra.mxu0 %v466
    %524 = vmatpush.bf16.msra.mxu0 %v463
    %525 = vmatpush.bf16.msra.mxu0 %v460
    %526 = vmatpush.bf16.msra.mxu0 %v457
    %527 = vmatpush.bf16.msra.mxu0 %v454
    %528 = vmatpush.bf16.msra.mxu0 %v451
    %529 = vmatpush.bf16.msra.mxu0 %v448
    %530 = vmatmul.bf16.gmra.mxu0 %v365
    %v531 = vpop.f32.mrf.mxu0
    %v532 = vadd.f32 %v179, %v531
    %v533 = vpop.f32.mrf.mxu0
    %v534 = vadd.f32 %v182, %v533
    %535 = vdwg.mxu0
    %v536 = vadd.f32 %v333, %v504
    %v537 = vadd.f32 %v335, %v506
    %v538 = vxor.u32 %v536, 2147483648
    %v539 = vxor.u32 %v537, 2147483648
    %v540 = vmul.f32 %v538, 1.442695
    %v541 = vpow.pop %v540
    %v542 = vmul.f32 %v539, 1.442695
    %v543 = vpow.pop %v542
    %v544 = vadd.f32 %v541, 1.0
    %v545 = vadd.f32 %v543, 1.0
    %v546 = vrcp.pop %v544
    %v547 = vmul.f32 %v544, %v546
    %v548 = vsub.f32 1.0, %v547
    %v549 = vmul.f32 %v546, %v548
    %v550 = vadd.f32 %v546, %v549
    %vm551 = vweird.f32 %v544
    %vm552 = vweird.f32 %v546
    %vm553 = vmor %vm551, %vm552
    %v554 = vsel %vm553, %v546, %v550
    %v555 = vand.u32 2147483647, %v544
    %vm556 = vcmp.eq.f32.partialorder %v555, 8.507059e+37
    %v557 = vand.u32 %v544, 2147483648
    %v558 = vor.u32 1.1754944e-38, %v557
    %v559 = vsel %vm556, %v558, %v554
    %v560 = vmul.f32 1.0, %v559
    %v561 = vrcp.pop %v545
    %v562 = vmul.f32 %v545, %v561
    %v563 = vsub.f32 1.0, %v562
    %v564 = vmul.f32 %v561, %v563
    %v565 = vadd.f32 %v561, %v564
    %vm566 = vweird.f32 %v545
    %vm567 = vweird.f32 %v561
    %vm568 = vmor %vm566, %vm567
    %v569 = vsel %vm568, %v561, %v565
    %v570 = vand.u32 2147483647, %v545
    %vm571 = vcmp.eq.f32.partialorder %v570, 8.507059e+37
    %v572 = vand.u32 %v545, 2147483648
    %v573 = vor.u32 1.1754944e-38, %v572
    %v574 = vsel %vm571, %v573, %v569
    %v575 = vmul.f32 1.0, %v574
    %v576 = vadd.f32 %v347, %v518
    %v577 = vadd.f32 %v349, %v520
    %v578 = vxor.u32 %v576, 2147483648
    %v579 = vxor.u32 %v577, 2147483648
    %v580 = vmul.f32 %v578, 1.442695
    %v581 = vpow.pop %v580
    %v582 = vmul.f32 %v579, 1.442695
    %v583 = vpow.pop %v582
    %v584 = vadd.f32 %v581, 1.0
    %v585 = vadd.f32 %v583, 1.0
    %v586 = vrcp.pop %v584
    %v587 = vmul.f32 %v584, %v586
    %v588 = vsub.f32 1.0, %v587
    %v589 = vmul.f32 %v586, %v588
    %v590 = vadd.f32 %v586, %v589
    %vm591 = vweird.f32 %v584
    %vm592 = vweird.f32 %v586
    %vm593 = vmor %vm591, %vm592
    %v594 = vsel %vm593, %v586, %v590
    %v595 = vand.u32 2147483647, %v584
    %vm596 = vcmp.eq.f32.partialorder %v595, 8.507059e+37
    %v597 = vand.u32 %v584, 2147483648
    %v598 = vor.u32 1.1754944e-38, %v597
    %v599 = vsel %vm596, %v598, %v594
    %v600 = vmul.f32 1.0, %v599
    %v601 = vrcp.pop %v585
    %v602 = vmul.f32 %v585, %v601
    %v603 = vsub.f32 1.0, %v602
    %v604 = vmul.f32 %v601, %v603
    %v605 = vadd.f32 %v601, %v604
    %vm606 = vweird.f32 %v585
    %vm607 = vweird.f32 %v601
    %vm608 = vmor %vm606, %vm607
    %v609 = vsel %vm608, %v601, %v605
    %v610 = vand.u32 2147483647, %v585
    %vm611 = vcmp.eq.f32.partialorder %v610, 8.507059e+37
    %v612 = vand.u32 %v585, 2147483648
    %v613 = vor.u32 1.1754944e-38, %v612
    %v614 = vsel %vm611, %v613, %v609
    %v615 = vmul.f32 1.0, %v614
    %v616 = vmul.f32 %v560, %v532
    %v617 = vmul.f32 %v575, %v534
    %v618 = vadd.f32 %v361, %v616
    %v619 = vadd.f32 %v363, %v617
    %v620 = vtanh.pop %v618
    %v621 = vtanh.pop %v619
    %v622 = vsub.f32 1.0, %v600
    %v623 = vsub.f32 1.0, %v615
    %v624 = vmul.f32 %v622, %v620
    %v625 = vmul.f32 %v623, %v621
    %v626 = vmul.f32 %v600, %v185
    %v627 = vmul.f32 %v615, %v186
    %v628 = vadd.f32 %v624, %v626
    %v629 = vadd.f32 %v625, %v627
    %p630 = scmp.lt.s32.totalorder %s184, %s183
    %s631 = scalar_select %p630, 1, 0
    %v632 = vstv %s631
    %vm633 = vcmp.eq.s32.totalorder %v632, 1
    %v634 = vsel %vm633, %v628, %v185
    %v635 = vsel %vm633, %v629, %v186
    %s636 = scalar_lea.vmem [#allocation4], 8
    %v637 = vld [vmem:[%s636] sm:$0xf]
    %v638 = vld [vmem:[%s636 + $0x4] sm:$0xf]
    %v641 = vunpack.c.l.b16 %v637
    %v642 = vunpack.c.l.b16 %v638
    %v643 = vpack.c.b16 %v642, %v641
    %645 = vmatpush.bf16.msra.mxu0 %v296
    %646 = vmatpush.bf16.msra.mxu0 %v293
    %647 = vmatpush.bf16.msra.mxu0 %v290
    %648 = vmatpush.bf16.msra.mxu0 %v287
    %649 = vmatpush.bf16.msra.mxu0 %v284
    %650 = vmatpush.bf16.msra.mxu0 %v281
    %651 = vmatpush.bf16.msra.mxu0 %v278
    %652 = vmatpush.bf16.msra.mxu0 %v275
    %653 = vmatmul.bf16.gmra.mxu0 %v643
    %v654 = vpop.f32.mrf.mxu0
    %v655 = vadd.f32 %v171, %v654
    %v656 = vpop.f32.mrf.mxu0
    %v657 = vadd.f32 %v174, %v656
    %658 = vdwg.mxu0
    %659 = vmatpush.bf16.msra.mxu0 %v297
    %660 = vmatpush.bf16.msra.mxu0 %v294
    %661 = vmatpush.bf16.msra.mxu0 %v291
    %662 = vmatpush.bf16.msra.mxu0 %v288
    %663 = vmatpush.bf16.msra.mxu0 %v285
    %664 = vmatpush.bf16.msra.mxu0 %v282
    %665 = vmatpush.bf16.msra.mxu0 %v279
    %666 = vmatpush.bf16.msra.mxu0 %v276
    %667 = vmatmul.bf16.gmra.mxu0 %v643
    %v668 = vpop.f32.mrf.mxu0
    %v669 = vadd.f32 %v172, %v668
    %v670 = vpop.f32.mrf.mxu0
    %v671 = vadd.f32 %v175, %v670
    %672 = vdwg.mxu0
    %673 = vmatpush.bf16.msra.mxu0 %v298
    %674 = vmatpush.bf16.msra.mxu0 %v295
    %675 = vmatpush.bf16.msra.mxu0 %v292
    %676 = vmatpush.bf16.msra.mxu0 %v289
    %677 = vmatpush.bf16.msra.mxu0 %v286
    %678 = vmatpush.bf16.msra.mxu0 %v283
    %679 = vmatpush.bf16.msra.mxu0 %v280
    %680 = vmatpush.bf16.msra.mxu0 %v277
    %681 = vmatmul.bf16.gmra.mxu0 %v643
    %v682 = vpop.f32.mrf.mxu0
    %v683 = vadd.f32 %v173, %v682
    %v684 = vpop.f32.mrf.mxu0
    %v685 = vadd.f32 %v176, %v684
    %686 = vdwg.mxu0
    %v687 = vpack.c.bf16 %v635, %v634
    %688 = vmatpush.bf16.msra.mxu0 %v467
    %689 = vmatpush.bf16.msra.mxu0 %v464
    %690 = vmatpush.bf16.msra.mxu0 %v461
    %691 = vmatpush.bf16.msra.mxu0 %v458
    %692 = vmatpush.bf16.msra.mxu0 %v455
    %693 = vmatpush.bf16.msra.mxu0 %v452
    %694 = vmatpush.bf16.msra.mxu0 %v449
    %695 = vmatpush.bf16.msra.mxu0 %v446
    %696 = vmatmul.bf16.gmra.mxu0 %v687
    %v697 = vpop.f32.mrf.mxu0
    %v698 = vadd.f32 %v177, %v697
    %v699 = vpop.f32.mrf.mxu0
    %v700 = vadd.f32 %v180, %v699
    %701 = vdwg.mxu0
    %702 = vmatpush.bf16.msra.mxu0 %v468
    %703 = vmatpush.bf16.msra.mxu0 %v465
    %704 = vmatpush.bf16.msra.mxu0 %v462
    %705 = vmatpush.bf16.msra.mxu0 %v459
    %706 = vmatpush.bf16.msra.mxu0 %v456
    %707 = vmatpush.bf16.msra.mxu0 %v453
    %708 = vmatpush.bf16.msra.mxu0 %v450
    %709 = vmatpush.bf16.msra.mxu0 %v447
    %710 = vmatmul.bf16.gmra.mxu0 %v687
    %v711 = vpop.f32.mrf.mxu0
    %v712 = vadd.f32 %v178, %v711
    %v713 = vpop.f32.mrf.mxu0
    %v714 = vadd.f32 %v181, %v713
    %715 = vdwg.mxu0
    %716 = vmatpush.bf16.msra.mxu0 %v469
    %717 = vmatpush.bf16.msra.mxu0 %v466
    %718 = vmatpush.bf16.msra.mxu0 %v463
    %719 = vmatpush.bf16.msra.mxu0 %v460
    %720 = vmatpush.bf16.msra.mxu0 %v457
    %721 = vmatpush.bf16.msra.mxu0 %v454
    %722 = vmatpush.bf16.msra.mxu0 %v451
    %723 = vmatpush.bf16.msra.mxu0 %v448
    %724 = vmatmul.bf16.gmra.mxu0 %v687
    %v725 = vpop.f32.mrf.mxu0
    %v726 = vadd.f32 %v179, %v725
    %v727 = vpop.f32.mrf.mxu0
    %v728 = vadd.f32 %v182, %v727
    %729 = vdwg.mxu0
    %v730 = vadd.f32 %v655, %v698
    %v731 = vadd.f32 %v657, %v700
    %v732 = vxor.u32 %v730, 2147483648
    %v733 = vxor.u32 %v731, 2147483648
    %v734 = vmul.f32 %v732, 1.442695
    %v735 = vpow.pop %v734
    %v736 = vmul.f32 %v733, 1.442695
    %v737 = vpow.pop %v736
    %v738 = vadd.f32 %v735, 1.0
    %v739 = vadd.f32 %v737, 1.0
    %v740 = vrcp.pop %v738
    %v741 = vmul.f32 %v738, %v740
    %v742 = vsub.f32 1.0, %v741
    %v743 = vmul.f32 %v740, %v742
    %v744 = vadd.f32 %v740, %v743
    %vm745 = vweird.f32 %v738
    %vm746 = vweird.f32 %v740
    %vm747 = vmor %vm745, %vm746
    %v748 = vsel %vm747, %v740, %v744
    %v749 = vand.u32 2147483647, %v738
    %vm750 = vcmp.eq.f32.partialorder %v749, 8.507059e+37
    %v751 = vand.u32 %v738, 2147483648
    %v752 = vor.u32 1.1754944e-38, %v751
    %v753 = vsel %vm750, %v752, %v748
    %v754 = vmul.f32 1.0, %v753
    %v755 = vrcp.pop %v739
    %v756 = vmul.f32 %v739, %v755
    %v757 = vsub.f32 1.0, %v756
    %v758 = vmul.f32 %v755, %v757
    %v759 = vadd.f32 %v755, %v758
    %vm760 = vweird.f32 %v739
    %vm761 = vweird.f32 %v755
    %vm762 = vmor %vm760, %vm761
    %v763 = vsel %vm762, %v755, %v759
    %v764 = vand.u32 2147483647, %v739
    %vm765 = vcmp.eq.f32.partialorder %v764, 8.507059e+37
    %v766 = vand.u32 %v739, 2147483648
    %v767 = vor.u32 1.1754944e-38, %v766
    %v768 = vsel %vm765, %v767, %v763
    %v769 = vmul.f32 1.0, %v768
    %v770 = vadd.f32 %v669, %v712
    %v771 = vadd.f32 %v671, %v714
    %v772 = vxor.u32 %v770, 2147483648
    %v773 = vxor.u32 %v771, 2147483648
    %v774 = vmul.f32 %v772, 1.442695
    %v775 = vpow.pop %v774
    %v776 = vmul.f32 %v773, 1.442695
    %v777 = vpow.pop %v776
    %v778 = vadd.f32 %v775, 1.0
    %v779 = vadd.f32 %v777, 1.0
    %v780 = vrcp.pop %v778
    %v781 = vmul.f32 %v778, %v780
    %v782 = vsub.f32 1.0, %v781
    %v783 = vmul.f32 %v780, %v782
    %v784 = vadd.f32 %v780, %v783
    %vm785 = vweird.f32 %v778
    %vm786 = vweird.f32 %v780
    %vm787 = vmor %vm785, %vm786
    %v788 = vsel %vm787, %v780, %v784
    %v789 = vand.u32 2147483647, %v778
    %vm790 = vcmp.eq.f32.partialorder %v789, 8.507059e+37
    %v791 = vand.u32 %v778, 2147483648
    %v792 = vor.u32 1.1754944e-38, %v791
    %v793 = vsel %vm790, %v792, %v788
    %v794 = vmul.f32 1.0, %v793
    %v795 = vrcp.pop %v779
    %v796 = vmul.f32 %v779, %v795
    %v797 = vsub.f32 1.0, %v796
    %v798 = vmul.f32 %v795, %v797
    %v799 = vadd.f32 %v795, %v798
    %vm800 = vweird.f32 %v779
    %vm801 = vweird.f32 %v795
    %vm802 = vmor %vm800, %vm801
    %v803 = vsel %vm802, %v795, %v799
    %v804 = vand.u32 2147483647, %v779
    %vm805 = vcmp.eq.f32.partialorder %v804, 8.507059e+37
    %v806 = vand.u32 %v779, 2147483648
    %v807 = vor.u32 1.1754944e-38, %v806
    %v808 = vsel %vm805, %v807, %v803
    %v809 = vmul.f32 1.0, %v808
    %v810 = vmul.f32 %v754, %v726
    %v811 = vmul.f32 %v769, %v728
    %v812 = vadd.f32 %v683, %v810
    %v813 = vadd.f32 %v685, %v811
    %v814 = vtanh.pop %v812
    %v815 = vtanh.pop %v813
    %v816 = vsub.f32 1.0, %v794
    %v817 = vsub.f32 1.0, %v809
    %v818 = vmul.f32 %v816, %v814
    %v819 = vmul.f32 %v817, %v815
    %v820 = vmul.f32 %v794, %v634
    %v821 = vmul.f32 %v809, %v635
    %v822 = vadd.f32 %v818, %v820
    %v823 = vadd.f32 %v819, %v821
    %s824 = sadd.s32 %s184, 1
    %p825 = scmp.lt.s32.totalorder %s824, %s183
    %s826 = scalar_select %p825, 1, 0
    %v827 = vstv %s826
    %vm828 = vcmp.eq.s32.totalorder %v827, 1
    %v829 = vsel %vm828, %v822, %v634
    %v830 = vsel %vm828, %v823, %v635
    %s831 = scalar_lea.vmem [#allocation4], 16
    %v832 = vld [vmem:[%s831] sm:$0xf]
    %v833 = vld [vmem:[%s831 + $0x4] sm:$0xf]
    %v836 = vunpack.c.l.b16 %v832
    %v837 = vunpack.c.l.b16 %v833
    %v838 = vpack.c.b16 %v837, %v836
    %840 = vmatpush.bf16.msra.mxu0 %v296
    %841 = vmatpush.bf16.msra.mxu0 %v293
    %842 = vmatpush.bf16.msra.mxu0 %v290
    %843 = vmatpush.bf16.msra.mxu0 %v287
    %844 = vmatpush.bf16.msra.mxu0 %v284
    %845 = vmatpush.bf16.msra.mxu0 %v281
    %846 = vmatpush.bf16.msra.mxu0 %v278
    %847 = vmatpush.bf16.msra.mxu0 %v275
    %848 = vmatmul.bf16.gmra.mxu0 %v838
    %v849 = vpop.f32.mrf.mxu0
    %v850 = vadd.f32 %v171, %v849
    %v851 = vpop.f32.mrf.mxu0
    %v852 = vadd.f32 %v174, %v851
    %853 = vdwg.mxu0
    %854 = vmatpush.bf16.msra.mxu0 %v297
    %855 = vmatpush.bf16.msra.mxu0 %v294
    %856 = vmatpush.bf16.msra.mxu0 %v291
    %857 = vmatpush.bf16.msra.mxu0 %v288
    %858 = vmatpush.bf16.msra.mxu0 %v285
    %859 = vmatpush.bf16.msra.mxu0 %v282
    %860 = vmatpush.bf16.msra.mxu0 %v279
    %861 = vmatpush.bf16.msra.mxu0 %v276
    %862 = vmatmul.bf16.gmra.mxu0 %v838
    %v863 = vpop.f32.mrf.mxu0
    %v864 = vadd.f32 %v172, %v863
    %v865 = vpop.f32.mrf.mxu0
    %v866 = vadd.f32 %v175, %v865
    %867 = vdwg.mxu0
    %868 = vmatpush.bf16.msra.mxu0 %v298
    %869 = vmatpush.bf16.msra.mxu0 %v295
    %870 = vmatpush.bf16.msra.mxu0 %v292
    %871 = vmatpush.bf16.msra.mxu0 %v289
    %872 = vmatpush.bf16.msra.mxu0 %v286
    %873 = vmatpush.bf16.msra.mxu0 %v283
    %874 = vmatpush.bf16.msra.mxu0 %v280
    %875 = vmatpush.bf16.msra.mxu0 %v277
    %876 = vmatmul.bf16.gmra.mxu0 %v838
    %v877 = vpop.f32.mrf.mxu0
    %v878 = vadd.f32 %v173, %v877
    %v879 = vpop.f32.mrf.mxu0
    %v880 = vadd.f32 %v176, %v879
    %881 = vdwg.mxu0
    %v882 = vpack.c.bf16 %v830, %v829
    %883 = vmatpush.bf16.msra.mxu0 %v467
    %884 = vmatpush.bf16.msra.mxu0 %v464
    %885 = vmatpush.bf16.msra.mxu0 %v461
    %886 = vmatpush.bf16.msra.mxu0 %v458
    %887 = vmatpush.bf16.msra.mxu0 %v455
    %888 = vmatpush.bf16.msra.mxu0 %v452
    %889 = vmatpush.bf16.msra.mxu0 %v449
    %890 = vmatpush.bf16.msra.mxu0 %v446
    %891 = vmatmul.bf16.gmra.mxu0 %v882
    %v892 = vpop.f32.mrf.mxu0
    %v893 = vadd.f32 %v177, %v892
    %v894 = vpop.f32.mrf.mxu0
    %v895 = vadd.f32 %v180, %v894
    %896 = vdwg.mxu0
    %897 = vmatpush.bf16.msra.mxu0 %v468
    %898 = vmatpush.bf16.msra.mxu0 %v465
    %899 = vmatpush.bf16.msra.mxu0 %v462
    %900 = vmatpush.bf16.msra.mxu0 %v459
    %901 = vmatpush.bf16.msra.mxu0 %v456
    %902 = vmatpush.bf16.msra.mxu0 %v453
    %903 = vmatpush.bf16.msra.mxu0 %v450
    %904 = vmatpush.bf16.msra.mxu0 %v447
    %905 = vmatmul.bf16.gmra.mxu0 %v882
    %v906 = vpop.f32.mrf.mxu0
    %v907 = vadd.f32 %v178, %v906
    %v908 = vpop.f32.mrf.mxu0
    %v909 = vadd.f32 %v181, %v908
    %910 = vdwg.mxu0
    %911 = vmatpush.bf16.msra.mxu0 %v469
    %912 = vmatpush.bf16.msra.mxu0 %v466
    %913 = vmatpush.bf16.msra.mxu0 %v463
    %914 = vmatpush.bf16.msra.mxu0 %v460
    %915 = vmatpush.bf16.msra.mxu0 %v457
    %916 = vmatpush.bf16.msra.mxu0 %v454
    %917 = vmatpush.bf16.msra.mxu0 %v451
    %918 = vmatpush.bf16.msra.mxu0 %v448
    %919 = vmatmul.bf16.gmra.mxu0 %v882
    %v920 = vpop.f32.mrf.mxu0
    %v921 = vadd.f32 %v179, %v920
    %v922 = vpop.f32.mrf.mxu0
    %v923 = vadd.f32 %v182, %v922
    %924 = vdwg.mxu0
    %v925 = vadd.f32 %v850, %v893
    %v926 = vadd.f32 %v852, %v895
    %v927 = vxor.u32 %v925, 2147483648
    %v928 = vxor.u32 %v926, 2147483648
    %v929 = vmul.f32 %v927, 1.442695
    %v930 = vpow.pop %v929
    %v931 = vmul.f32 %v928, 1.442695
    %v932 = vpow.pop %v931
    %v933 = vadd.f32 %v930, 1.0
    %v934 = vadd.f32 %v932, 1.0
    %v935 = vrcp.pop %v933
    %v936 = vmul.f32 %v933, %v935
    %v937 = vsub.f32 1.0, %v936
    %v938 = vmul.f32 %v935, %v937
    %v939 = vadd.f32 %v935, %v938
    %vm940 = vweird.f32 %v933
    %vm941 = vweird.f32 %v935
    %vm942 = vmor %vm940, %vm941
    %v943 = vsel %vm942, %v935, %v939
    %v944 = vand.u32 2147483647, %v933
    %vm945 = vcmp.eq.f32.partialorder %v944, 8.507059e+37
    %v946 = vand.u32 %v933, 2147483648
    %v947 = vor.u32 1.1754944e-38, %v946
    %v948 = vsel %vm945, %v947, %v943
    %v949 = vmul.f32 1.0, %v948
    %v950 = vrcp.pop %v934
    %v951 = vmul.f32 %v934, %v950
    %v952 = vsub.f32 1.0, %v951
    %v953 = vmul.f32 %v950, %v952
    %v954 = vadd.f32 %v950, %v953
    %vm955 = vweird.f32 %v934
    %vm956 = vweird.f32 %v950
    %vm957 = vmor %vm955, %vm956
    %v958 = vsel %vm957, %v950, %v954
    %v959 = vand.u32 2147483647, %v934
    %vm960 = vcmp.eq.f32.partialorder %v959, 8.507059e+37
    %v961 = vand.u32 %v934, 2147483648
    %v962 = vor.u32 1.1754944e-38, %v961
    %v963 = vsel %vm960, %v962, %v958
    %v964 = vmul.f32 1.0, %v963
    %v965 = vadd.f32 %v864, %v907
    %v966 = vadd.f32 %v866, %v909
    %v967 = vxor.u32 %v965, 2147483648
    %v968 = vxor.u32 %v966, 2147483648
    %v969 = vmul.f32 %v967, 1.442695
    %v970 = vpow.pop %v969
    %v971 = vmul.f32 %v968, 1.442695
    %v972 = vpow.pop %v971
    %v973 = vadd.f32 %v970, 1.0
    %v974 = vadd.f32 %v972, 1.0
    %v975 = vrcp.pop %v973
    %v976 = vmul.f32 %v973, %v975
    %v977 = vsub.f32 1.0, %v976
    %v978 = vmul.f32 %v975, %v977
    %v979 = vadd.f32 %v975, %v978
    %vm980 = vweird.f32 %v973
    %vm981 = vweird.f32 %v975
    %vm982 = vmor %vm980, %vm981
    %v983 = vsel %vm982, %v975, %v979
    %v984 = vand.u32 2147483647, %v973
    %vm985 = vcmp.eq.f32.partialorder %v984, 8.507059e+37
    %v986 = vand.u32 %v973, 2147483648
    %v987 = vor.u32 1.1754944e-38, %v986
    %v988 = vsel %vm985, %v987, %v983
    %v989 = vmul.f32 1.0, %v988
    %v990 = vrcp.pop %v974
    %v991 = vmul.f32 %v974, %v990
    %v992 = vsub.f32 1.0, %v991
    %v993 = vmul.f32 %v990, %v992
    %v994 = vadd.f32 %v990, %v993
    %vm995 = vweird.f32 %v974
    %vm996 = vweird.f32 %v990
    %vm997 = vmor %vm995, %vm996
    %v998 = vsel %vm997, %v990, %v994
    %v999 = vand.u32 2147483647, %v974
    %vm1000 = vcmp.eq.f32.partialorder %v999, 8.507059e+37
    %v1001 = vand.u32 %v974, 2147483648
    %v1002 = vor.u32 1.1754944e-38, %v1001
    %v1003 = vsel %vm1000, %v1002, %v998
    %v1004 = vmul.f32 1.0, %v1003
    %v1005 = vmul.f32 %v949, %v921
    %v1006 = vmul.f32 %v964, %v923
    %v1007 = vadd.f32 %v878, %v1005
    %v1008 = vadd.f32 %v880, %v1006
    %v1009 = vtanh.pop %v1007
    %v1010 = vtanh.pop %v1008
    %v1011 = vsub.f32 1.0, %v989
    %v1012 = vsub.f32 1.0, %v1004
    %v1013 = vmul.f32 %v1011, %v1009
    %v1014 = vmul.f32 %v1012, %v1010
    %v1015 = vmul.f32 %v989, %v829
    %v1016 = vmul.f32 %v1004, %v830
    %v1017 = vadd.f32 %v1013, %v1015
    %v1018 = vadd.f32 %v1014, %v1016
    %s1019 = sadd.s32 %s184, 2
    %p1020 = scmp.lt.s32.totalorder %s1019, %s183
    %s1021 = scalar_select %p1020, 1, 0
    %v1022 = vstv %s1021
    %vm1023 = vcmp.eq.s32.totalorder %v1022, 1
    %v1024 = vsel %vm1023, %v1017, %v829
    %v1025 = vsel %vm1023, %v1018, %v830
    %s1026 = scalar_lea.vmem [#allocation4], 24
    %v1027 = vld [vmem:[%s1026] sm:$0xf]
    %v1028 = vld [vmem:[%s1026 + $0x4] sm:$0xf]
    %v1031 = vunpack.c.l.b16 %v1027
    %v1032 = vunpack.c.l.b16 %v1028
    %v1033 = vpack.c.b16 %v1032, %v1031
    %1035 = vmatpush.bf16.msra.mxu0 %v296
    %1036 = vmatpush.bf16.msra.mxu0 %v293
    %1037 = vmatpush.bf16.msra.mxu0 %v290
    %1038 = vmatpush.bf16.msra.mxu0 %v287
    %1039 = vmatpush.bf16.msra.mxu0 %v284
    %1040 = vmatpush.bf16.msra.mxu0 %v281
    %1041 = vmatpush.bf16.msra.mxu0 %v278
    %1042 = vmatpush.bf16.msra.mxu0 %v275
    %1043 = vmatmul.bf16.gmra.mxu0 %v1033
    %v1044 = vpop.f32.mrf.mxu0
    %v1045 = vadd.f32 %v171, %v1044
    %v1046 = vpop.f32.mrf.mxu0
    %v1047 = vadd.f32 %v174, %v1046
    %1048 = vdwg.mxu0
    %1049 = vmatpush.bf16.msra.mxu0 %v297
    %1050 = vmatpush.bf16.msra.mxu0 %v294
    %1051 = vmatpush.bf16.msra.mxu0 %v291
    %1052 = vmatpush.bf16.msra.mxu0 %v288
    %1053 = vmatpush.bf16.msra.mxu0 %v285
    %1054 = vmatpush.bf16.msra.mxu0 %v282
    %1055 = vmatpush.bf16.msra.mxu0 %v279
    %1056 = vmatpush.bf16.msra.mxu0 %v276
    %1057 = vmatmul.bf16.gmra.mxu0 %v1033
    %v1058 = vpop.f32.mrf.mxu0
    %v1059 = vadd.f32 %v172, %v1058
    %v1060 = vpop.f32.mrf.mxu0
    %v1061 = vadd.f32 %v175, %v1060
    %1062 = vdwg.mxu0
    %1063 = vmatpush.bf16.msra.mxu0 %v298
    %1064 = vmatpush.bf16.msra.mxu0 %v295
    %1065 = vmatpush.bf16.msra.mxu0 %v292
    %1066 = vmatpush.bf16.msra.mxu0 %v289
    %1067 = vmatpush.bf16.msra.mxu0 %v286
    %1068 = vmatpush.bf16.msra.mxu0 %v283
    %1069 = vmatpush.bf16.msra.mxu0 %v280
    %1070 = vmatpush.bf16.msra.mxu0 %v277
    %1071 = vmatmul.bf16.gmra.mxu0 %v1033
    %v1072 = vpop.f32.mrf.mxu0
    %v1073 = vadd.f32 %v173, %v1072
    %v1074 = vpop.f32.mrf.mxu0
    %v1075 = vadd.f32 %v176, %v1074
    %1076 = vdwg.mxu0
    %v1077 = vpack.c.bf16 %v1025, %v1024
    %1078 = vmatpush.bf16.msra.mxu0 %v467
    %1079 = vmatpush.bf16.msra.mxu0 %v464
    %1080 = vmatpush.bf16.msra.mxu0 %v461
    %1081 = vmatpush.bf16.msra.mxu0 %v458
    %1082 = vmatpush.bf16.msra.mxu0 %v455
    %1083 = vmatpush.bf16.msra.mxu0 %v452
    %1084 = vmatpush.bf16.msra.mxu0 %v449
    %1085 = vmatpush.bf16.msra.mxu0 %v446
    %1086 = vmatmul.bf16.gmra.mxu0 %v1077
    %v1087 = vpop.f32.mrf.mxu0
    %v1088 = vadd.f32 %v177, %v1087
    %v1089 = vpop.f32.mrf.mxu0
    %v1090 = vadd.f32 %v180, %v1089
    %1091 = vdwg.mxu0
    %1092 = vmatpush.bf16.msra.mxu0 %v468
    %1093 = vmatpush.bf16.msra.mxu0 %v465
    %1094 = vmatpush.bf16.msra.mxu0 %v462
    %1095 = vmatpush.bf16.msra.mxu0 %v459
    %1096 = vmatpush.bf16.msra.mxu0 %v456
    %1097 = vmatpush.bf16.msra.mxu0 %v453
    %1098 = vmatpush.bf16.msra.mxu0 %v450
    %1099 = vmatpush.bf16.msra.mxu0 %v447
    %1100 = vmatmul.bf16.gmra.mxu0 %v1077
    %v1101 = vpop.f32.mrf.mxu0
    %v1102 = vadd.f32 %v178, %v1101
    %v1103 = vpop.f32.mrf.mxu0
    %v1104 = vadd.f32 %v181, %v1103
    %1105 = vdwg.mxu0
    %1106 = vmatpush.bf16.msra.mxu0 %v469
    %1107 = vmatpush.bf16.msra.mxu0 %v466
    %1108 = vmatpush.bf16.msra.mxu0 %v463
    %1109 = vmatpush.bf16.msra.mxu0 %v460
    %1110 = vmatpush.bf16.msra.mxu0 %v457
    %1111 = vmatpush.bf16.msra.mxu0 %v454
    %1112 = vmatpush.bf16.msra.mxu0 %v451
    %1113 = vmatpush.bf16.msra.mxu0 %v448
    %1114 = vmatmul.bf16.gmra.mxu0 %v1077
    %v1115 = vpop.f32.mrf.mxu0
    %v1116 = vadd.f32 %v179, %v1115
    %v1117 = vpop.f32.mrf.mxu0
    %v1118 = vadd.f32 %v182, %v1117
    %1119 = vdwg.mxu0
    %v1120 = vadd.f32 %v1045, %v1088
    %v1121 = vadd.f32 %v1047, %v1090
    %v1122 = vxor.u32 %v1120, 2147483648
    %v1123 = vxor.u32 %v1121, 2147483648
    %v1124 = vmul.f32 %v1122, 1.442695
    %v1125 = vpow.pop %v1124
    %v1126 = vmul.f32 %v1123, 1.442695
    %v1127 = vpow.pop %v1126
    %v1128 = vadd.f32 %v1125, 1.0
    %v1129 = vadd.f32 %v1127, 1.0
    %v1130 = vrcp.pop %v1128
    %v1131 = vmul.f32 %v1128, %v1130
    %v1132 = vsub.f32 1.0, %v1131
    %v1133 = vmul.f32 %v1130, %v1132
    %v1134 = vadd.f32 %v1130, %v1133
    %vm1135 = vweird.f32 %v1128
    %vm1136 = vweird.f32 %v1130
    %vm1137 = vmor %vm1135, %vm1136
    %v1138 = vsel %vm1137, %v1130, %v1134
    %v1139 = vand.u32 2147483647, %v1128
    %vm1140 = vcmp.eq.f32.partialorder %v1139, 8.507059e+37
    %v1141 = vand.u32 %v1128, 2147483648
    %v1142 = vor.u32 1.1754944e-38, %v1141
    %v1143 = vsel %vm1140, %v1142, %v1138
    %v1144 = vmul.f32 1.0, %v1143
    %v1145 = vrcp.pop %v1129
    %v1146 = vmul.f32 %v1129, %v1145
    %v1147 = vsub.f32 1.0, %v1146
    %v1148 = vmul.f32 %v1145, %v1147
    %v1149 = vadd.f32 %v1145, %v1148
    %vm1150 = vweird.f32 %v1129
    %vm1151 = vweird.f32 %v1145
    %vm1152 = vmor %vm1150, %vm1151
    %v1153 = vsel %vm1152, %v1145, %v1149
    %v1154 = vand.u32 2147483647, %v1129
    %vm1155 = vcmp.eq.f32.partialorder %v1154, 8.507059e+37
    %v1156 = vand.u32 %v1129, 2147483648
    %v1157 = vor.u32 1.1754944e-38, %v1156
    %v1158 = vsel %vm1155, %v1157, %v1153
    %v1159 = vmul.f32 1.0, %v1158
    %v1160 = vadd.f32 %v1059, %v1102
    %v1161 = vadd.f32 %v1061, %v1104
    %v1162 = vxor.u32 %v1160, 2147483648
    %v1163 = vxor.u32 %v1161, 2147483648
    %v1164 = vmul.f32 %v1162, 1.442695
    %v1165 = vpow.pop %v1164
    %v1166 = vmul.f32 %v1163, 1.442695
    %v1167 = vpow.pop %v1166
    %v1168 = vadd.f32 %v1165, 1.0
    %v1169 = vadd.f32 %v1167, 1.0
    %v1170 = vrcp.pop %v1168
    %v1171 = vmul.f32 %v1168, %v1170
    %v1172 = vsub.f32 1.0, %v1171
    %v1173 = vmul.f32 %v1170, %v1172
    %v1174 = vadd.f32 %v1170, %v1173
    %vm1175 = vweird.f32 %v1168
    %vm1176 = vweird.f32 %v1170
    %vm1177 = vmor %vm1175, %vm1176
    %v1178 = vsel %vm1177, %v1170, %v1174
    %v1179 = vand.u32 2147483647, %v1168
    %vm1180 = vcmp.eq.f32.partialorder %v1179, 8.507059e+37
    %v1181 = vand.u32 %v1168, 2147483648
    %v1182 = vor.u32 1.1754944e-38, %v1181
    %v1183 = vsel %vm1180, %v1182, %v1178
    %v1184 = vmul.f32 1.0, %v1183
    %v1185 = vrcp.pop %v1169
    %v1186 = vmul.f32 %v1169, %v1185
    %v1187 = vsub.f32 1.0, %v1186
    %v1188 = vmul.f32 %v1185, %v1187
    %v1189 = vadd.f32 %v1185, %v1188
    %vm1190 = vweird.f32 %v1169
    %vm1191 = vweird.f32 %v1185
    %vm1192 = vmor %vm1190, %vm1191
    %v1193 = vsel %vm1192, %v1185, %v1189
    %v1194 = vand.u32 2147483647, %v1169
    %vm1195 = vcmp.eq.f32.partialorder %v1194, 8.507059e+37
    %v1196 = vand.u32 %v1169, 2147483648
    %v1197 = vor.u32 1.1754944e-38, %v1196
    %v1198 = vsel %vm1195, %v1197, %v1193
    %v1199 = vmul.f32 1.0, %v1198
    %v1200 = vmul.f32 %v1144, %v1116
    %v1201 = vmul.f32 %v1159, %v1118
    %v1202 = vadd.f32 %v1073, %v1200
    %v1203 = vadd.f32 %v1075, %v1201
    %v1204 = vtanh.pop %v1202
    %v1205 = vtanh.pop %v1203
    %v1206 = vsub.f32 1.0, %v1184
    %v1207 = vsub.f32 1.0, %v1199
    %v1208 = vmul.f32 %v1206, %v1204
    %v1209 = vmul.f32 %v1207, %v1205
    %v1210 = vmul.f32 %v1184, %v1024
    %v1211 = vmul.f32 %v1199, %v1025
    %v1212 = vadd.f32 %v1208, %v1210
    %v1213 = vadd.f32 %v1209, %v1211
    %s1214 = sadd.s32 %s184, 3
    %p1215 = scmp.lt.s32.totalorder %s1214, %s183
    %s1216 = scalar_select %p1215, 1, 0
    %v1217 = vstv %s1216
    %vm1218 = vcmp.eq.s32.totalorder %v1217, 1
    %v1219 = vsel %vm1218, %v1212, %v1024
    %v1220 = vsel %vm1218, %v1213, %v1025
    %s1221 = scalar_lea.vmem [#allocation4], 32
    %v1222 = vld [vmem:[%s1221] sm:$0xf]
    %v1223 = vld [vmem:[%s1221 + $0x4] sm:$0xf]
    %v1226 = vunpack.c.l.b16 %v1222
    %v1227 = vunpack.c.l.b16 %v1223
    %v1228 = vpack.c.b16 %v1227, %v1226
    %1230 = vmatpush.bf16.msra.mxu0 %v296
    %1231 = vmatpush.bf16.msra.mxu0 %v293
    %1232 = vmatpush.bf16.msra.mxu0 %v290
    %1233 = vmatpush.bf16.msra.mxu0 %v287
    %1234 = vmatpush.bf16.msra.mxu0 %v284
    %1235 = vmatpush.bf16.msra.mxu0 %v281
    %1236 = vmatpush.bf16.msra.mxu0 %v278
    %1237 = vmatpush.bf16.msra.mxu0 %v275
    %1238 = vmatmul.bf16.gmra.mxu0 %v1228
    %v1239 = vpop.f32.mrf.mxu0
    %v1240 = vadd.f32 %v171, %v1239
    %v1241 = vpop.f32.mrf.mxu0
    %v1242 = vadd.f32 %v174, %v1241
    %1243 = vdwg.mxu0
    %1244 = vmatpush.bf16.msra.mxu0 %v297
    %1245 = vmatpush.bf16.msra.mxu0 %v294
    %1246 = vmatpush.bf16.msra.mxu0 %v291
    %1247 = vmatpush.bf16.msra.mxu0 %v288
    %1248 = vmatpush.bf16.msra.mxu0 %v285
    %1249 = vmatpush.bf16.msra.mxu0 %v282
    %1250 = vmatpush.bf16.msra.mxu0 %v279
    %1251 = vmatpush.bf16.msra.mxu0 %v276
    %1252 = vmatmul.bf16.gmra.mxu0 %v1228
    %v1253 = vpop.f32.mrf.mxu0
    %v1254 = vadd.f32 %v172, %v1253
    %v1255 = vpop.f32.mrf.mxu0
    %v1256 = vadd.f32 %v175, %v1255
    %1257 = vdwg.mxu0
    %1258 = vmatpush.bf16.msra.mxu0 %v298
    %1259 = vmatpush.bf16.msra.mxu0 %v295
    %1260 = vmatpush.bf16.msra.mxu0 %v292
    %1261 = vmatpush.bf16.msra.mxu0 %v289
    %1262 = vmatpush.bf16.msra.mxu0 %v286
    %1263 = vmatpush.bf16.msra.mxu0 %v283
    %1264 = vmatpush.bf16.msra.mxu0 %v280
    %1265 = vmatpush.bf16.msra.mxu0 %v277
    %1266 = vmatmul.bf16.gmra.mxu0 %v1228
    %v1267 = vpop.f32.mrf.mxu0
    %v1268 = vadd.f32 %v173, %v1267
    %v1269 = vpop.f32.mrf.mxu0
    %v1270 = vadd.f32 %v176, %v1269
    %1271 = vdwg.mxu0
    %v1272 = vpack.c.bf16 %v1220, %v1219
    %1273 = vmatpush.bf16.msra.mxu0 %v467
    %1274 = vmatpush.bf16.msra.mxu0 %v464
    %1275 = vmatpush.bf16.msra.mxu0 %v461
    %1276 = vmatpush.bf16.msra.mxu0 %v458
    %1277 = vmatpush.bf16.msra.mxu0 %v455
    %1278 = vmatpush.bf16.msra.mxu0 %v452
    %1279 = vmatpush.bf16.msra.mxu0 %v449
    %1280 = vmatpush.bf16.msra.mxu0 %v446
    %1281 = vmatmul.bf16.gmra.mxu0 %v1272
    %v1282 = vpop.f32.mrf.mxu0
    %v1283 = vadd.f32 %v177, %v1282
    %v1284 = vpop.f32.mrf.mxu0
    %v1285 = vadd.f32 %v180, %v1284
    %1286 = vdwg.mxu0
    %1287 = vmatpush.bf16.msra.mxu0 %v468
    %1288 = vmatpush.bf16.msra.mxu0 %v465
    %1289 = vmatpush.bf16.msra.mxu0 %v462
    %1290 = vmatpush.bf16.msra.mxu0 %v459
    %1291 = vmatpush.bf16.msra.mxu0 %v456
    %1292 = vmatpush.bf16.msra.mxu0 %v453
    %1293 = vmatpush.bf16.msra.mxu0 %v450
    %1294 = vmatpush.bf16.msra.mxu0 %v447
    %1295 = vmatmul.bf16.gmra.mxu0 %v1272
    %v1296 = vpop.f32.mrf.mxu0
    %v1297 = vadd.f32 %v178, %v1296
    %v1298 = vpop.f32.mrf.mxu0
    %v1299 = vadd.f32 %v181, %v1298
    %1300 = vdwg.mxu0
    %1301 = vmatpush.bf16.msra.mxu0 %v469
    %1302 = vmatpush.bf16.msra.mxu0 %v466
    %1303 = vmatpush.bf16.msra.mxu0 %v463
    %1304 = vmatpush.bf16.msra.mxu0 %v460
    %1305 = vmatpush.bf16.msra.mxu0 %v457
    %1306 = vmatpush.bf16.msra.mxu0 %v454
    %1307 = vmatpush.bf16.msra.mxu0 %v451
    %1308 = vmatpush.bf16.msra.mxu0 %v448
    %1309 = vmatmul.bf16.gmra.mxu0 %v1272
    %v1310 = vpop.f32.mrf.mxu0
    %v1311 = vadd.f32 %v179, %v1310
    %v1312 = vpop.f32.mrf.mxu0
    %v1313 = vadd.f32 %v182, %v1312
    %1314 = vdwg.mxu0
    %v1315 = vadd.f32 %v1240, %v1283
    %v1316 = vadd.f32 %v1242, %v1285
    %v1317 = vxor.u32 %v1315, 2147483648
    %v1318 = vxor.u32 %v1316, 2147483648
    %v1319 = vmul.f32 %v1317, 1.442695
    %v1320 = vpow.pop %v1319
    %v1321 = vmul.f32 %v1318, 1.442695
    %v1322 = vpow.pop %v1321
    %v1323 = vadd.f32 %v1320, 1.0
    %v1324 = vadd.f32 %v1322, 1.0
    %v1325 = vrcp.pop %v1323
    %v1326 = vmul.f32 %v1323, %v1325
    %v1327 = vsub.f32 1.0, %v1326
    %v1328 = vmul.f32 %v1325, %v1327
    %v1329 = vadd.f32 %v1325, %v1328
    %vm1330 = vweird.f32 %v1323
    %vm1331 = vweird.f32 %v1325
    %vm1332 = vmor %vm1330, %vm1331
    %v1333 = vsel %vm1332, %v1325, %v1329
    %v1334 = vand.u32 2147483647, %v1323
    %vm1335 = vcmp.eq.f32.partialorder %v1334, 8.507059e+37
    %v1336 = vand.u32 %v1323, 2147483648
    %v1337 = vor.u32 1.1754944e-38, %v1336
    %v1338 = vsel %vm1335, %v1337, %v1333
    %v1339 = vmul.f32 1.0, %v1338
    %v1340 = vrcp.pop %v1324
    %v1341 = vmul.f32 %v1324, %v1340
    %v1342 = vsub.f32 1.0, %v1341
    %v1343 = vmul.f32 %v1340, %v1342
    %v1344 = vadd.f32 %v1340, %v1343
    %vm1345 = vweird.f32 %v1324
    %vm1346 = vweird.f32 %v1340
    %vm1347 = vmor %vm1345, %vm1346
    %v1348 = vsel %vm1347, %v1340, %v1344
    %v1349 = vand.u32 2147483647, %v1324
    %vm1350 = vcmp.eq.f32.partialorder %v1349, 8.507059e+37
    %v1351 = vand.u32 %v1324, 2147483648
    %v1352 = vor.u32 1.1754944e-38, %v1351
    %v1353 = vsel %vm1350, %v1352, %v1348
    %v1354 = vmul.f32 1.0, %v1353
    %v1355 = vadd.f32 %v1254, %v1297
    %v1356 = vadd.f32 %v1256, %v1299
    %v1357 = vxor.u32 %v1355, 2147483648
    %v1358 = vxor.u32 %v1356, 2147483648
    %v1359 = vmul.f32 %v1357, 1.442695
    %v1360 = vpow.pop %v1359
    %v1361 = vmul.f32 %v1358, 1.442695
    %v1362 = vpow.pop %v1361
    %v1363 = vadd.f32 %v1360, 1.0
    %v1364 = vadd.f32 %v1362, 1.0
    %v1365 = vrcp.pop %v1363
    %v1366 = vmul.f32 %v1363, %v1365
    %v1367 = vsub.f32 1.0, %v1366
    %v1368 = vmul.f32 %v1365, %v1367
    %v1369 = vadd.f32 %v1365, %v1368
    %vm1370 = vweird.f32 %v1363
    %vm1371 = vweird.f32 %v1365
    %vm1372 = vmor %vm1370, %vm1371
    %v1373 = vsel %vm1372, %v1365, %v1369
    %v1374 = vand.u32 2147483647, %v1363
    %vm1375 = vcmp.eq.f32.partialorder %v1374, 8.507059e+37
    %v1376 = vand.u32 %v1363, 2147483648
    %v1377 = vor.u32 1.1754944e-38, %v1376
    %v1378 = vsel %vm1375, %v1377, %v1373
    %v1379 = vmul.f32 1.0, %v1378
    %v1380 = vrcp.pop %v1364
    %v1381 = vmul.f32 %v1364, %v1380
    %v1382 = vsub.f32 1.0, %v1381
    %v1383 = vmul.f32 %v1380, %v1382
    %v1384 = vadd.f32 %v1380, %v1383
    %vm1385 = vweird.f32 %v1364
    %vm1386 = vweird.f32 %v1380
    %vm1387 = vmor %vm1385, %vm1386
    %v1388 = vsel %vm1387, %v1380, %v1384
    %v1389 = vand.u32 2147483647, %v1364
    %vm1390 = vcmp.eq.f32.partialorder %v1389, 8.507059e+37
    %v1391 = vand.u32 %v1364, 2147483648
    %v1392 = vor.u32 1.1754944e-38, %v1391
    %v1393 = vsel %vm1390, %v1392, %v1388
    %v1394 = vmul.f32 1.0, %v1393
    %v1395 = vmul.f32 %v1339, %v1311
    %v1396 = vmul.f32 %v1354, %v1313
    %v1397 = vadd.f32 %v1268, %v1395
    %v1398 = vadd.f32 %v1270, %v1396
    %v1399 = vtanh.pop %v1397
    %v1400 = vtanh.pop %v1398
    %v1401 = vsub.f32 1.0, %v1379
    %v1402 = vsub.f32 1.0, %v1394
    %v1403 = vmul.f32 %v1401, %v1399
    %v1404 = vmul.f32 %v1402, %v1400
    %v1405 = vmul.f32 %v1379, %v1219
    %v1406 = vmul.f32 %v1394, %v1220
    %v1407 = vadd.f32 %v1403, %v1405
    %v1408 = vadd.f32 %v1404, %v1406
    %s1409 = sadd.s32 %s184, 4
    %p1410 = scmp.lt.s32.totalorder %s1409, %s183
    %s1411 = scalar_select %p1410, 1, 0
    %v1412 = vstv %s1411
    %vm1413 = vcmp.eq.s32.totalorder %v1412, 1
    %v1414 = vsel %vm1413, %v1407, %v1219
    %v1415 = vsel %vm1413, %v1408, %v1220
    %s1416 = scalar_lea.vmem [#allocation4], 40
    %v1417 = vld [vmem:[%s1416] sm:$0xf]
    %v1418 = vld [vmem:[%s1416 + $0x4] sm:$0xf]
    %v1421 = vunpack.c.l.b16 %v1417
    %v1422 = vunpack.c.l.b16 %v1418
    %v1423 = vpack.c.b16 %v1422, %v1421
    %1425 = vmatpush.bf16.msra.mxu0 %v296
    %1426 = vmatpush.bf16.msra.mxu0 %v293
    %1427 = vmatpush.bf16.msra.mxu0 %v290
    %1428 = vmatpush.bf16.msra.mxu0 %v287
    %1429 = vmatpush.bf16.msra.mxu0 %v284
    %1430 = vmatpush.bf16.msra.mxu0 %v281
    %1431 = vmatpush.bf16.msra.mxu0 %v278
    %1432 = vmatpush.bf16.msra.mxu0 %v275
    %1433 = vmatmul.bf16.gmra.mxu0 %v1423
    %v1434 = vpop.f32.mrf.mxu0
    %v1435 = vadd.f32 %v171, %v1434
    %v1436 = vpop.f32.mrf.mxu0
    %v1437 = vadd.f32 %v174, %v1436
    %1438 = vdwg.mxu0
    %1439 = vmatpush.bf16.msra.mxu0 %v297
    %1440 = vmatpush.bf16.msra.mxu0 %v294
    %1441 = vmatpush.bf16.msra.mxu0 %v291
    %1442 = vmatpush.bf16.msra.mxu0 %v288
    %1443 = vmatpush.bf16.msra.mxu0 %v285
    %1444 = vmatpush.bf16.msra.mxu0 %v282
    %1445 = vmatpush.bf16.msra.mxu0 %v279
    %1446 = vmatpush.bf16.msra.mxu0 %v276
    %1447 = vmatmul.bf16.gmra.mxu0 %v1423
    %v1448 = vpop.f32.mrf.mxu0
    %v1449 = vadd.f32 %v172, %v1448
    %v1450 = vpop.f32.mrf.mxu0
    %v1451 = vadd.f32 %v175, %v1450
    %1452 = vdwg.mxu0
    %1453 = vmatpush.bf16.msra.mxu0 %v298
    %1454 = vmatpush.bf16.msra.mxu0 %v295
    %1455 = vmatpush.bf16.msra.mxu0 %v292
    %1456 = vmatpush.bf16.msra.mxu0 %v289
    %1457 = vmatpush.bf16.msra.mxu0 %v286
    %1458 = vmatpush.bf16.msra.mxu0 %v283
    %1459 = vmatpush.bf16.msra.mxu0 %v280
    %1460 = vmatpush.bf16.msra.mxu0 %v277
    %1461 = vmatmul.bf16.gmra.mxu0 %v1423
    %v1462 = vpop.f32.mrf.mxu0
    %v1463 = vadd.f32 %v173, %v1462
    %v1464 = vpop.f32.mrf.mxu0
    %v1465 = vadd.f32 %v176, %v1464
    %1466 = vdwg.mxu0
    %v1467 = vpack.c.bf16 %v1415, %v1414
    %1468 = vmatpush.bf16.msra.mxu0 %v467
    %1469 = vmatpush.bf16.msra.mxu0 %v464
    %1470 = vmatpush.bf16.msra.mxu0 %v461
    %1471 = vmatpush.bf16.msra.mxu0 %v458
    %1472 = vmatpush.bf16.msra.mxu0 %v455
    %1473 = vmatpush.bf16.msra.mxu0 %v452
    %1474 = vmatpush.bf16.msra.mxu0 %v449
    %1475 = vmatpush.bf16.msra.mxu0 %v446
    %1476 = vmatmul.bf16.gmra.mxu0 %v1467
    %v1477 = vpop.f32.mrf.mxu0
    %v1478 = vadd.f32 %v177, %v1477
    %v1479 = vpop.f32.mrf.mxu0
    %v1480 = vadd.f32 %v180, %v1479
    %1481 = vdwg.mxu0
    %1482 = vmatpush.bf16.msra.mxu0 %v468
    %1483 = vmatpush.bf16.msra.mxu0 %v465
    %1484 = vmatpush.bf16.msra.mxu0 %v462
    %1485 = vmatpush.bf16.msra.mxu0 %v459
    %1486 = vmatpush.bf16.msra.mxu0 %v456
    %1487 = vmatpush.bf16.msra.mxu0 %v453
    %1488 = vmatpush.bf16.msra.mxu0 %v450
    %1489 = vmatpush.bf16.msra.mxu0 %v447
    %1490 = vmatmul.bf16.gmra.mxu0 %v1467
    %v1491 = vpop.f32.mrf.mxu0
    %v1492 = vadd.f32 %v178, %v1491
    %v1493 = vpop.f32.mrf.mxu0
    %v1494 = vadd.f32 %v181, %v1493
    %1495 = vdwg.mxu0
    %1496 = vmatpush.bf16.msra.mxu0 %v469
    %1497 = vmatpush.bf16.msra.mxu0 %v466
    %1498 = vmatpush.bf16.msra.mxu0 %v463
    %1499 = vmatpush.bf16.msra.mxu0 %v460
    %1500 = vmatpush.bf16.msra.mxu0 %v457
    %1501 = vmatpush.bf16.msra.mxu0 %v454
    %1502 = vmatpush.bf16.msra.mxu0 %v451
    %1503 = vmatpush.bf16.msra.mxu0 %v448
    %1504 = vmatmul.bf16.gmra.mxu0 %v1467
    %v1505 = vpop.f32.mrf.mxu0
    %v1506 = vadd.f32 %v179, %v1505
    %v1507 = vpop.f32.mrf.mxu0
    %v1508 = vadd.f32 %v182, %v1507
    %1509 = vdwg.mxu0
    %v1510 = vadd.f32 %v1435, %v1478
    %v1511 = vadd.f32 %v1437, %v1480
    %v1512 = vxor.u32 %v1510, 2147483648
    %v1513 = vxor.u32 %v1511, 2147483648
    %v1514 = vmul.f32 %v1512, 1.442695
    %v1515 = vpow.pop %v1514
    %v1516 = vmul.f32 %v1513, 1.442695
    %v1517 = vpow.pop %v1516
    %v1518 = vadd.f32 %v1515, 1.0
    %v1519 = vadd.f32 %v1517, 1.0
    %v1520 = vrcp.pop %v1518
    %v1521 = vmul.f32 %v1518, %v1520
    %v1522 = vsub.f32 1.0, %v1521
    %v1523 = vmul.f32 %v1520, %v1522
    %v1524 = vadd.f32 %v1520, %v1523
    %vm1525 = vweird.f32 %v1518
    %vm1526 = vweird.f32 %v1520
    %vm1527 = vmor %vm1525, %vm1526
    %v1528 = vsel %vm1527, %v1520, %v1524
    %v1529 = vand.u32 2147483647, %v1518
    %vm1530 = vcmp.eq.f32.partialorder %v1529, 8.507059e+37
    %v1531 = vand.u32 %v1518, 2147483648
    %v1532 = vor.u32 1.1754944e-38, %v1531
    %v1533 = vsel %vm1530, %v1532, %v1528
    %v1534 = vmul.f32 1.0, %v1533
    %v1535 = vrcp.pop %v1519
    %v1536 = vmul.f32 %v1519, %v1535
    %v1537 = vsub.f32 1.0, %v1536
    %v1538 = vmul.f32 %v1535, %v1537
    %v1539 = vadd.f32 %v1535, %v1538
    %vm1540 = vweird.f32 %v1519
    %vm1541 = vweird.f32 %v1535
    %vm1542 = vmor %vm1540, %vm1541
    %v1543 = vsel %vm1542, %v1535, %v1539
    %v1544 = vand.u32 2147483647, %v1519
    %vm1545 = vcmp.eq.f32.partialorder %v1544, 8.507059e+37
    %v1546 = vand.u32 %v1519, 2147483648
    %v1547 = vor.u32 1.1754944e-38, %v1546
    %v1548 = vsel %vm1545, %v1547, %v1543
    %v1549 = vmul.f32 1.0, %v1548
    %v1550 = vadd.f32 %v1449, %v1492
    %v1551 = vadd.f32 %v1451, %v1494
    %v1552 = vxor.u32 %v1550, 2147483648
    %v1553 = vxor.u32 %v1551, 2147483648
    %v1554 = vmul.f32 %v1552, 1.442695
    %v1555 = vpow.pop %v1554
    %v1556 = vmul.f32 %v1553, 1.442695
    %v1557 = vpow.pop %v1556
    %v1558 = vadd.f32 %v1555, 1.0
    %v1559 = vadd.f32 %v1557, 1.0
    %v1560 = vrcp.pop %v1558
    %v1561 = vmul.f32 %v1558, %v1560
    %v1562 = vsub.f32 1.0, %v1561
    %v1563 = vmul.f32 %v1560, %v1562
    %v1564 = vadd.f32 %v1560, %v1563
    %vm1565 = vweird.f32 %v1558
    %vm1566 = vweird.f32 %v1560
    %vm1567 = vmor %vm1565, %vm1566
    %v1568 = vsel %vm1567, %v1560, %v1564
    %v1569 = vand.u32 2147483647, %v1558
    %vm1570 = vcmp.eq.f32.partialorder %v1569, 8.507059e+37
    %v1571 = vand.u32 %v1558, 2147483648
    %v1572 = vor.u32 1.1754944e-38, %v1571
    %v1573 = vsel %vm1570, %v1572, %v1568
    %v1574 = vmul.f32 1.0, %v1573
    %v1575 = vrcp.pop %v1559
    %v1576 = vmul.f32 %v1559, %v1575
    %v1577 = vsub.f32 1.0, %v1576
    %v1578 = vmul.f32 %v1575, %v1577
    %v1579 = vadd.f32 %v1575, %v1578
    %vm1580 = vweird.f32 %v1559
    %vm1581 = vweird.f32 %v1575
    %vm1582 = vmor %vm1580, %vm1581
    %v1583 = vsel %vm1582, %v1575, %v1579
    %v1584 = vand.u32 2147483647, %v1559
    %vm1585 = vcmp.eq.f32.partialorder %v1584, 8.507059e+37
    %v1586 = vand.u32 %v1559, 2147483648
    %v1587 = vor.u32 1.1754944e-38, %v1586
    %v1588 = vsel %vm1585, %v1587, %v1583
    %v1589 = vmul.f32 1.0, %v1588
    %v1590 = vmul.f32 %v1534, %v1506
    %v1591 = vmul.f32 %v1549, %v1508
    %v1592 = vadd.f32 %v1463, %v1590
    %v1593 = vadd.f32 %v1465, %v1591
    %v1594 = vtanh.pop %v1592
    %v1595 = vtanh.pop %v1593
    %v1596 = vsub.f32 1.0, %v1574
    %v1597 = vsub.f32 1.0, %v1589
    %v1598 = vmul.f32 %v1596, %v1594
    %v1599 = vmul.f32 %v1597, %v1595
    %v1600 = vmul.f32 %v1574, %v1414
    %v1601 = vmul.f32 %v1589, %v1415
    %v1602 = vadd.f32 %v1598, %v1600
    %v1603 = vadd.f32 %v1599, %v1601
    %s1604 = sadd.s32 %s184, 5
    %p1605 = scmp.lt.s32.totalorder %s1604, %s183
    %s1606 = scalar_select %p1605, 1, 0
    %v1607 = vstv %s1606
    %vm1608 = vcmp.eq.s32.totalorder %v1607, 1
    %v1609 = vsel %vm1608, %v1602, %v1414
    %v1610 = vsel %vm1608, %v1603, %v1415
    %s1611 = scalar_lea.vmem [#allocation4], 48
    %v1612 = vld [vmem:[%s1611] sm:$0xf]
    %v1613 = vld [vmem:[%s1611 + $0x4] sm:$0xf]
    %v1616 = vunpack.c.l.b16 %v1612
    %v1617 = vunpack.c.l.b16 %v1613
    %v1618 = vpack.c.b16 %v1617, %v1616
    %1620 = vmatpush.bf16.msra.mxu0 %v296
    %1621 = vmatpush.bf16.msra.mxu0 %v293
    %1622 = vmatpush.bf16.msra.mxu0 %v290
    %1623 = vmatpush.bf16.msra.mxu0 %v287
    %1624 = vmatpush.bf16.msra.mxu0 %v284
    %1625 = vmatpush.bf16.msra.mxu0 %v281
    %1626 = vmatpush.bf16.msra.mxu0 %v278
    %1627 = vmatpush.bf16.msra.mxu0 %v275
    %1628 = vmatmul.bf16.gmra.mxu0 %v1618
    %v1629 = vpop.f32.mrf.mxu0
    %v1630 = vadd.f32 %v171, %v1629
    %v1631 = vpop.f32.mrf.mxu0
    %v1632 = vadd.f32 %v174, %v1631
    %1633 = vdwg.mxu0
    %1634 = vmatpush.bf16.msra.mxu0 %v297
    %1635 = vmatpush.bf16.msra.mxu0 %v294
    %1636 = vmatpush.bf16.msra.mxu0 %v291
    %1637 = vmatpush.bf16.msra.mxu0 %v288
    %1638 = vmatpush.bf16.msra.mxu0 %v285
    %1639 = vmatpush.bf16.msra.mxu0 %v282
    %1640 = vmatpush.bf16.msra.mxu0 %v279
    %1641 = vmatpush.bf16.msra.mxu0 %v276
    %1642 = vmatmul.bf16.gmra.mxu0 %v1618
    %v1643 = vpop.f32.mrf.mxu0
    %v1644 = vadd.f32 %v172, %v1643
    %v1645 = vpop.f32.mrf.mxu0
    %v1646 = vadd.f32 %v175, %v1645
    %1647 = vdwg.mxu0
    %1648 = vmatpush.bf16.msra.mxu0 %v298
    %1649 = vmatpush.bf16.msra.mxu0 %v295
    %1650 = vmatpush.bf16.msra.mxu0 %v292
    %1651 = vmatpush.bf16.msra.mxu0 %v289
    %1652 = vmatpush.bf16.msra.mxu0 %v286
    %1653 = vmatpush.bf16.msra.mxu0 %v283
    %1654 = vmatpush.bf16.msra.mxu0 %v280
    %1655 = vmatpush.bf16.msra.mxu0 %v277
    %1656 = vmatmul.bf16.gmra.mxu0 %v1618
    %v1657 = vpop.f32.mrf.mxu0
    %v1658 = vadd.f32 %v173, %v1657
    %v1659 = vpop.f32.mrf.mxu0
    %v1660 = vadd.f32 %v176, %v1659
    %1661 = vdwg.mxu0
    %v1662 = vpack.c.bf16 %v1610, %v1609
    %1663 = vmatpush.bf16.msra.mxu0 %v467
    %1664 = vmatpush.bf16.msra.mxu0 %v464
    %1665 = vmatpush.bf16.msra.mxu0 %v461
    %1666 = vmatpush.bf16.msra.mxu0 %v458
    %1667 = vmatpush.bf16.msra.mxu0 %v455
    %1668 = vmatpush.bf16.msra.mxu0 %v452
    %1669 = vmatpush.bf16.msra.mxu0 %v449
    %1670 = vmatpush.bf16.msra.mxu0 %v446
    %1671 = vmatmul.bf16.gmra.mxu0 %v1662
    %v1672 = vpop.f32.mrf.mxu0
    %v1673 = vadd.f32 %v177, %v1672
    %v1674 = vpop.f32.mrf.mxu0
    %v1675 = vadd.f32 %v180, %v1674
    %1676 = vdwg.mxu0
    %1677 = vmatpush.bf16.msra.mxu0 %v468
    %1678 = vmatpush.bf16.msra.mxu0 %v465
    %1679 = vmatpush.bf16.msra.mxu0 %v462
    %1680 = vmatpush.bf16.msra.mxu0 %v459
    %1681 = vmatpush.bf16.msra.mxu0 %v456
    %1682 = vmatpush.bf16.msra.mxu0 %v453
    %1683 = vmatpush.bf16.msra.mxu0 %v450
    %1684 = vmatpush.bf16.msra.mxu0 %v447
    %1685 = vmatmul.bf16.gmra.mxu0 %v1662
    %v1686 = vpop.f32.mrf.mxu0
    %v1687 = vadd.f32 %v178, %v1686
    %v1688 = vpop.f32.mrf.mxu0
    %v1689 = vadd.f32 %v181, %v1688
    %1690 = vdwg.mxu0
    %1691 = vmatpush.bf16.msra.mxu0 %v469
    %1692 = vmatpush.bf16.msra.mxu0 %v466
    %1693 = vmatpush.bf16.msra.mxu0 %v463
    %1694 = vmatpush.bf16.msra.mxu0 %v460
    %1695 = vmatpush.bf16.msra.mxu0 %v457
    %1696 = vmatpush.bf16.msra.mxu0 %v454
    %1697 = vmatpush.bf16.msra.mxu0 %v451
    %1698 = vmatpush.bf16.msra.mxu0 %v448
    %1699 = vmatmul.bf16.gmra.mxu0 %v1662
    %v1700 = vpop.f32.mrf.mxu0
    %v1701 = vadd.f32 %v179, %v1700
    %v1702 = vpop.f32.mrf.mxu0
    %v1703 = vadd.f32 %v182, %v1702
    %1704 = vdwg.mxu0
    %v1705 = vadd.f32 %v1630, %v1673
    %v1706 = vadd.f32 %v1632, %v1675
    %v1707 = vxor.u32 %v1705, 2147483648
    %v1708 = vxor.u32 %v1706, 2147483648
    %v1709 = vmul.f32 %v1707, 1.442695
    %v1710 = vpow.pop %v1709
    %v1711 = vmul.f32 %v1708, 1.442695
    %v1712 = vpow.pop %v1711
    %v1713 = vadd.f32 %v1710, 1.0
    %v1714 = vadd.f32 %v1712, 1.0
    %v1715 = vrcp.pop %v1713
    %v1716 = vmul.f32 %v1713, %v1715
    %v1717 = vsub.f32 1.0, %v1716
    %v1718 = vmul.f32 %v1715, %v1717
    %v1719 = vadd.f32 %v1715, %v1718
    %vm1720 = vweird.f32 %v1713
    %vm1721 = vweird.f32 %v1715
    %vm1722 = vmor %vm1720, %vm1721
    %v1723 = vsel %vm1722, %v1715, %v1719
    %v1724 = vand.u32 2147483647, %v1713
    %vm1725 = vcmp.eq.f32.partialorder %v1724, 8.507059e+37
    %v1726 = vand.u32 %v1713, 2147483648
    %v1727 = vor.u32 1.1754944e-38, %v1726
    %v1728 = vsel %vm1725, %v1727, %v1723
    %v1729 = vmul.f32 1.0, %v1728
    %v1730 = vrcp.pop %v1714
    %v1731 = vmul.f32 %v1714, %v1730
    %v1732 = vsub.f32 1.0, %v1731
    %v1733 = vmul.f32 %v1730, %v1732
    %v1734 = vadd.f32 %v1730, %v1733
    %vm1735 = vweird.f32 %v1714
    %vm1736 = vweird.f32 %v1730
    %vm1737 = vmor %vm1735, %vm1736
    %v1738 = vsel %vm1737, %v1730, %v1734
    %v1739 = vand.u32 2147483647, %v1714
    %vm1740 = vcmp.eq.f32.partialorder %v1739, 8.507059e+37
    %v1741 = vand.u32 %v1714, 2147483648
    %v1742 = vor.u32 1.1754944e-38, %v1741
    %v1743 = vsel %vm1740, %v1742, %v1738
    %v1744 = vmul.f32 1.0, %v1743
    %v1745 = vadd.f32 %v1644, %v1687
    %v1746 = vadd.f32 %v1646, %v1689
    %v1747 = vxor.u32 %v1745, 2147483648
    %v1748 = vxor.u32 %v1746, 2147483648
    %v1749 = vmul.f32 %v1747, 1.442695
    %v1750 = vpow.pop %v1749
    %v1751 = vmul.f32 %v1748, 1.442695
    %v1752 = vpow.pop %v1751
    %v1753 = vadd.f32 %v1750, 1.0
    %v1754 = vadd.f32 %v1752, 1.0
    %v1755 = vrcp.pop %v1753
    %v1756 = vmul.f32 %v1753, %v1755
    %v1757 = vsub.f32 1.0, %v1756
    %v1758 = vmul.f32 %v1755, %v1757
    %v1759 = vadd.f32 %v1755, %v1758
    %vm1760 = vweird.f32 %v1753
    %vm1761 = vweird.f32 %v1755
    %vm1762 = vmor %vm1760, %vm1761
    %v1763 = vsel %vm1762, %v1755, %v1759
    %v1764 = vand.u32 2147483647, %v1753
    %vm1765 = vcmp.eq.f32.partialorder %v1764, 8.507059e+37
    %v1766 = vand.u32 %v1753, 2147483648
    %v1767 = vor.u32 1.1754944e-38, %v1766
    %v1768 = vsel %vm1765, %v1767, %v1763
    %v1769 = vmul.f32 1.0, %v1768
    %v1770 = vrcp.pop %v1754
    %v1771 = vmul.f32 %v1754, %v1770
    %v1772 = vsub.f32 1.0, %v1771
    %v1773 = vmul.f32 %v1770, %v1772
    %v1774 = vadd.f32 %v1770, %v1773
    %vm1775 = vweird.f32 %v1754
    %vm1776 = vweird.f32 %v1770
    %vm1777 = vmor %vm1775, %vm1776
    %v1778 = vsel %vm1777, %v1770, %v1774
    %v1779 = vand.u32 2147483647, %v1754
    %vm1780 = vcmp.eq.f32.partialorder %v1779, 8.507059e+37
    %v1781 = vand.u32 %v1754, 2147483648
    %v1782 = vor.u32 1.1754944e-38, %v1781
    %v1783 = vsel %vm1780, %v1782, %v1778
    %v1784 = vmul.f32 1.0, %v1783
    %v1785 = vmul.f32 %v1729, %v1701
    %v1786 = vmul.f32 %v1744, %v1703
    %v1787 = vadd.f32 %v1658, %v1785
    %v1788 = vadd.f32 %v1660, %v1786
    %v1789 = vtanh.pop %v1787
    %v1790 = vtanh.pop %v1788
    %v1791 = vsub.f32 1.0, %v1769
    %v1792 = vsub.f32 1.0, %v1784
    %v1793 = vmul.f32 %v1791, %v1789
    %v1794 = vmul.f32 %v1792, %v1790
    %v1795 = vmul.f32 %v1769, %v1609
    %v1796 = vmul.f32 %v1784, %v1610
    %v1797 = vadd.f32 %v1793, %v1795
    %v1798 = vadd.f32 %v1794, %v1796
    %s1799 = sadd.s32 %s184, 6
    %p1800 = scmp.lt.s32.totalorder %s1799, %s183
    %s1801 = scalar_select %p1800, 1, 0
    %v1802 = vstv %s1801
    %vm1803 = vcmp.eq.s32.totalorder %v1802, 1
    %v1804 = vsel %vm1803, %v1797, %v1609
    %v1805 = vsel %vm1803, %v1798, %v1610
    %s1806 = scalar_lea.vmem [#allocation4], 56
    %v1807 = vld [vmem:[%s1806] sm:$0xf]
    %v1808 = vld [vmem:[%s1806 + $0x4] sm:$0xf]
    %v1811 = vunpack.c.l.b16 %v1807
    %v1812 = vunpack.c.l.b16 %v1808
    %v1813 = vpack.c.b16 %v1812, %v1811
    %1815 = vmatpush.bf16.msra.mxu0 %v296
    %1816 = vmatpush.bf16.msra.mxu0 %v293
    %1817 = vmatpush.bf16.msra.mxu0 %v290
    %1818 = vmatpush.bf16.msra.mxu0 %v287
    %1819 = vmatpush.bf16.msra.mxu0 %v284
    %1820 = vmatpush.bf16.msra.mxu0 %v281
    %1821 = vmatpush.bf16.msra.mxu0 %v278
    %1822 = vmatpush.bf16.msra.mxu0 %v275
    %1823 = vmatmul.bf16.gmra.mxu0 %v1813
    %v1824 = vpop.f32.mrf.mxu0
    %v1825 = vadd.f32 %v171, %v1824
    %v1826 = vpop.f32.mrf.mxu0
    %v1827 = vadd.f32 %v174, %v1826
    %1828 = vdwg.mxu0
    %1829 = vmatpush.bf16.msra.mxu0 %v297
    %1830 = vmatpush.bf16.msra.mxu0 %v294
    %1831 = vmatpush.bf16.msra.mxu0 %v291
    %1832 = vmatpush.bf16.msra.mxu0 %v288
    %1833 = vmatpush.bf16.msra.mxu0 %v285
    %1834 = vmatpush.bf16.msra.mxu0 %v282
    %1835 = vmatpush.bf16.msra.mxu0 %v279
    %1836 = vmatpush.bf16.msra.mxu0 %v276
    %1837 = vmatmul.bf16.gmra.mxu0 %v1813
    %v1838 = vpop.f32.mrf.mxu0
    %v1839 = vadd.f32 %v172, %v1838
    %v1840 = vpop.f32.mrf.mxu0
    %v1841 = vadd.f32 %v175, %v1840
    %1842 = vdwg.mxu0
    %1843 = vmatpush.bf16.msra.mxu0 %v298
    %1844 = vmatpush.bf16.msra.mxu0 %v295
    %1845 = vmatpush.bf16.msra.mxu0 %v292
    %1846 = vmatpush.bf16.msra.mxu0 %v289
    %1847 = vmatpush.bf16.msra.mxu0 %v286
    %1848 = vmatpush.bf16.msra.mxu0 %v283
    %1849 = vmatpush.bf16.msra.mxu0 %v280
    %1850 = vmatpush.bf16.msra.mxu0 %v277
    %1851 = vmatmul.bf16.gmra.mxu0 %v1813
    %v1852 = vpop.f32.mrf.mxu0
    %v1853 = vadd.f32 %v173, %v1852
    %v1854 = vpop.f32.mrf.mxu0
    %v1855 = vadd.f32 %v176, %v1854
    %1856 = vdwg.mxu0
    %v1857 = vpack.c.bf16 %v1805, %v1804
    %1858 = vmatpush.bf16.msra.mxu0 %v467
    %1859 = vmatpush.bf16.msra.mxu0 %v464
    %1860 = vmatpush.bf16.msra.mxu0 %v461
    %1861 = vmatpush.bf16.msra.mxu0 %v458
    %1862 = vmatpush.bf16.msra.mxu0 %v455
    %1863 = vmatpush.bf16.msra.mxu0 %v452
    %1864 = vmatpush.bf16.msra.mxu0 %v449
    %1865 = vmatpush.bf16.msra.mxu0 %v446
    %1866 = vmatmul.bf16.gmra.mxu0 %v1857
    %v1867 = vpop.f32.mrf.mxu0
    %v1868 = vadd.f32 %v177, %v1867
    %v1869 = vpop.f32.mrf.mxu0
    %v1870 = vadd.f32 %v180, %v1869
    %1871 = vdwg.mxu0
    %1872 = vmatpush.bf16.msra.mxu0 %v468
    %1873 = vmatpush.bf16.msra.mxu0 %v465
    %1874 = vmatpush.bf16.msra.mxu0 %v462
    %1875 = vmatpush.bf16.msra.mxu0 %v459
    %1876 = vmatpush.bf16.msra.mxu0 %v456
    %1877 = vmatpush.bf16.msra.mxu0 %v453
    %1878 = vmatpush.bf16.msra.mxu0 %v450
    %1879 = vmatpush.bf16.msra.mxu0 %v447
    %1880 = vmatmul.bf16.gmra.mxu0 %v1857
    %v1881 = vpop.f32.mrf.mxu0
    %v1882 = vadd.f32 %v178, %v1881
    %v1883 = vpop.f32.mrf.mxu0
    %v1884 = vadd.f32 %v181, %v1883
    %1885 = vdwg.mxu0
    %1886 = vmatpush.bf16.msra.mxu0 %v469
    %1887 = vmatpush.bf16.msra.mxu0 %v466
    %1888 = vmatpush.bf16.msra.mxu0 %v463
    %1889 = vmatpush.bf16.msra.mxu0 %v460
    %1890 = vmatpush.bf16.msra.mxu0 %v457
    %1891 = vmatpush.bf16.msra.mxu0 %v454
    %1892 = vmatpush.bf16.msra.mxu0 %v451
    %1893 = vmatpush.bf16.msra.mxu0 %v448
    %1894 = vmatmul.bf16.gmra.mxu0 %v1857
    %v1895 = vpop.f32.mrf.mxu0
    %v1896 = vadd.f32 %v179, %v1895
    %v1897 = vpop.f32.mrf.mxu0
    %v1898 = vadd.f32 %v182, %v1897
    %1899 = vdwg.mxu0
    %v1900 = vadd.f32 %v1825, %v1868
    %v1901 = vadd.f32 %v1827, %v1870
    %v1902 = vxor.u32 %v1900, 2147483648
    %v1903 = vxor.u32 %v1901, 2147483648
    %v1904 = vmul.f32 %v1902, 1.442695
    %v1905 = vpow.pop %v1904
    %v1906 = vmul.f32 %v1903, 1.442695
    %v1907 = vpow.pop %v1906
    %v1908 = vadd.f32 %v1905, 1.0
    %v1909 = vadd.f32 %v1907, 1.0
    %v1910 = vrcp.pop %v1908
    %v1911 = vmul.f32 %v1908, %v1910
    %v1912 = vsub.f32 1.0, %v1911
    %v1913 = vmul.f32 %v1910, %v1912
    %v1914 = vadd.f32 %v1910, %v1913
    %vm1915 = vweird.f32 %v1908
    %vm1916 = vweird.f32 %v1910
    %vm1917 = vmor %vm1915, %vm1916
    %v1918 = vsel %vm1917, %v1910, %v1914
    %v1919 = vand.u32 2147483647, %v1908
    %vm1920 = vcmp.eq.f32.partialorder %v1919, 8.507059e+37
    %v1921 = vand.u32 %v1908, 2147483648
    %v1922 = vor.u32 1.1754944e-38, %v1921
    %v1923 = vsel %vm1920, %v1922, %v1918
    %v1924 = vmul.f32 1.0, %v1923
    %v1925 = vrcp.pop %v1909
    %v1926 = vmul.f32 %v1909, %v1925
    %v1927 = vsub.f32 1.0, %v1926
    %v1928 = vmul.f32 %v1925, %v1927
    %v1929 = vadd.f32 %v1925, %v1928
    %vm1930 = vweird.f32 %v1909
    %vm1931 = vweird.f32 %v1925
    %vm1932 = vmor %vm1930, %vm1931
    %v1933 = vsel %vm1932, %v1925, %v1929
    %v1934 = vand.u32 2147483647, %v1909
    %vm1935 = vcmp.eq.f32.partialorder %v1934, 8.507059e+37
    %v1936 = vand.u32 %v1909, 2147483648
    %v1937 = vor.u32 1.1754944e-38, %v1936
    %v1938 = vsel %vm1935, %v1937, %v1933
    %v1939 = vmul.f32 1.0, %v1938
    %v1940 = vadd.f32 %v1839, %v1882
    %v1941 = vadd.f32 %v1841, %v1884
    %v1942 = vxor.u32 %v1940, 2147483648
    %v1943 = vxor.u32 %v1941, 2147483648
    %v1944 = vmul.f32 %v1942, 1.442695
    %v1945 = vpow.pop %v1944
    %v1946 = vmul.f32 %v1943, 1.442695
    %v1947 = vpow.pop %v1946
    %v1948 = vadd.f32 %v1945, 1.0
    %v1949 = vadd.f32 %v1947, 1.0
    %v1950 = vrcp.pop %v1948
    %v1951 = vmul.f32 %v1948, %v1950
    %v1952 = vsub.f32 1.0, %v1951
    %v1953 = vmul.f32 %v1950, %v1952
    %v1954 = vadd.f32 %v1950, %v1953
    %vm1955 = vweird.f32 %v1948
    %vm1956 = vweird.f32 %v1950
    %vm1957 = vmor %vm1955, %vm1956
    %v1958 = vsel %vm1957, %v1950, %v1954
    %v1959 = vand.u32 2147483647, %v1948
    %vm1960 = vcmp.eq.f32.partialorder %v1959, 8.507059e+37
    %v1961 = vand.u32 %v1948, 2147483648
    %v1962 = vor.u32 1.1754944e-38, %v1961
    %v1963 = vsel %vm1960, %v1962, %v1958
    %v1964 = vmul.f32 1.0, %v1963
    %v1965 = vrcp.pop %v1949
    %v1966 = vmul.f32 %v1949, %v1965
    %v1967 = vsub.f32 1.0, %v1966
    %v1968 = vmul.f32 %v1965, %v1967
    %v1969 = vadd.f32 %v1965, %v1968
    %vm1970 = vweird.f32 %v1949
    %vm1971 = vweird.f32 %v1965
    %vm1972 = vmor %vm1970, %vm1971
    %v1973 = vsel %vm1972, %v1965, %v1969
    %v1974 = vand.u32 2147483647, %v1949
    %vm1975 = vcmp.eq.f32.partialorder %v1974, 8.507059e+37
    %v1976 = vand.u32 %v1949, 2147483648
    %v1977 = vor.u32 1.1754944e-38, %v1976
    %v1978 = vsel %vm1975, %v1977, %v1973
    %v1979 = vmul.f32 1.0, %v1978
    %v1980 = vmul.f32 %v1924, %v1896
    %v1981 = vmul.f32 %v1939, %v1898
    %v1982 = vadd.f32 %v1853, %v1980
    %v1983 = vadd.f32 %v1855, %v1981
    %v1984 = vtanh.pop %v1982
    %v1985 = vtanh.pop %v1983
    %v1986 = vsub.f32 1.0, %v1964
    %v1987 = vsub.f32 1.0, %v1979
    %v1988 = vmul.f32 %v1986, %v1984
    %v1989 = vmul.f32 %v1987, %v1985
    %v1990 = vmul.f32 %v1964, %v1804
    %v1991 = vmul.f32 %v1979, %v1805
    %v1992 = vadd.f32 %v1988, %v1990
    %v1993 = vadd.f32 %v1989, %v1991
    %s1994 = sadd.s32 %s184, 7
    %p1995 = scmp.lt.s32.totalorder %s1994, %s183
    %s1996 = scalar_select %p1995, 1, 0
    %v1997 = vstv %s1996
    %vm1998 = vcmp.eq.s32.totalorder %v1997, 1
    %v1999 = vsel %vm1998, %v1992, %v1804
    %v2000 = vsel %vm1998, %v1993, %v1805
    %2001 = vst [vmem:[#allocation13] sm:$0xff] %v1999
    %2002 = vst [vmem:[#allocation13 + $0x8] sm:$0xff] %v2000
    // Predicated region
    $region46: #{tpu_custom_call.1} parent=1 // pred_check
      _
    $region47: #{tpu_custom_call.1} parent=1 // pred_check_branch
      %2004 = sbr.rel (0) target = $region49
    $region48: #{tpu_custom_call.1} parent=1 // pred_region
      %2006 = vsyncadd [#allocation6], 0
      %s2007 = sshll.u32 [#allocation13], 4
      %s2008 = int_to_ptr.vmem [resolvable:$true] %s2007
      %s2009 = sshll.u32 %s6, 4
      %s2010 = int_to_ptr.hbm [resolvable:$true] %s2009
      %2015 = dma.vmem_to_hbm [thread:$0]  %s2008, 256, %s2010, [#allocation6], 128, 128, 8
    $region49: #{tpu_custom_call.1} parent=1 // pred_fallthru
      _
    // Predicated region
    $region50: #{tpu_custom_call.1} parent=1 // pred_check
      _
    $region51: #{tpu_custom_call.1} parent=1 // pred_check_branch
      %2017 = sbr.rel (0) target = $region53
    $region52: #{tpu_custom_call.1} parent=1 // pred_region
      %2019 = dma.done [#allocation6], 256
    $region53: #{tpu_custom_call.1} parent=1 // pred_fallthru
      _
    %2020 = vsyncpa [#allocation5], 1
    %2021 = vsyncpa [#allocation8], 1
    %2022 = vsyncpa [#allocation11], 1
    %2023 = vsyncpa [#allocation6], 1

</llo_original>
